<compile_context>
chip_gen: v5e
topology: v5e:2x2
jax: 0.10.0
libtpu: 0.0.40
codegen_flags: <defaults>
</compile_context>

<pallas_src>
import functools

import numpy as np
import jax
import jax.numpy as jnp
from jax.experimental import pallas as pl
from jax.experimental.pallas import tpu as pltpu


def _round_up(x, m):
    return (x + m - 1) // m * m


# ----------------------------------------------------------------------------
# get_2d_sincos_pos_embed (MAE-style, matches the torch helper used upstream)
# ----------------------------------------------------------------------------
def _get_1d_sincos_pos_embed_from_grid(embed_dim, pos):
    omega = np.arange(embed_dim // 2, dtype=np.float64)
    omega /= embed_dim / 2.0
    omega = 1.0 / 10000 ** omega
    pos = pos.reshape(-1)
    out = np.einsum("m,d->md", pos, omega)
    return np.concatenate([np.sin(out), np.cos(out)], axis=1)


def get_2d_sincos_pos_embed(embed_dim, grid_size):
    H, W = grid_size
    grid_h = np.arange(H, dtype=np.float32)
    grid_w = np.arange(W, dtype=np.float32)
    grid = np.meshgrid(grid_w, grid_h)          # w first (torch helper convention)
    grid = np.stack(grid, axis=0).reshape([2, 1, H, W])
    emb_h = _get_1d_sincos_pos_embed_from_grid(embed_dim // 2, grid[0])
    emb_w = _get_1d_sincos_pos_embed_from_grid(embed_dim // 2, grid[1])
    return np.concatenate([emb_h, emb_w], axis=1).astype(np.float32)  # (H*W, D)


# ----------------------------------------------------------------------------
# Pallas kernel 1: tiled batched matmul + fused add (1x1 conv / per-voxel lin.)
#   - M tiled & software-pipelined (grid over M, "parallel"),
#   - N padded to a multiple of 128 for lane-dense stores,
#   - `add` fuses either a bias (1, N) or a per-row-tile addend (tm, N)
#     such as a positional embedding whose period equals the row tile.
# ----------------------------------------------------------------------------
def _matmul_add_kernel(a_ref, b_ref, c_ref, o_ref):
    o_ref[...] = (jnp.dot(a_ref[...], b_ref[...],
                          preferred_element_type=jnp.float32) + c_ref[...])


def pallas_matmul(a, b, add=None, tm=512, compute_dtype=jnp.bfloat16):
    """(M, K) @ (K, N) [+ add] with M-tiling; returns f32 (M, N)."""
    M, K = a.shape
    K2, N = b.shape
    assert K == K2
    Npad = _round_up(N, 128)
    if Npad != N:
        b = jnp.pad(b, ((0, 0), (0, Npad - N)))

    tm = max(8, min(tm, _round_up(M, 8)))
    Mpad = _round_up(M, tm)
    if Mpad != M:
        a = jnp.pad(a, ((0, Mpad - M), (0, 0)))

    if add is None:
        add = jnp.zeros((1, Npad), jnp.float32)
    else:
        add = jnp.asarray(add, jnp.float32)
        if add.ndim == 1:
            add = add[None, :]
        if add.shape[-1] != Npad:
            add = jnp.pad(add, ((0, 0), (0, Npad - add.shape[-1])))
    P = add.shape[0]
    assert P in (1, tm), f"add rows must be 1 or tm={tm}, got {P}"

    out = pl.pallas_call(
        _matmul_add_kernel,
        out_shape=jax.ShapeDtypeStruct((Mpad, Npad), jnp.float32),
        grid=(Mpad // tm,),
        in_specs=[pl.BlockSpec((tm, K), lambda i: (i, 0)),
                  pl.BlockSpec((K, Npad), lambda i: (0, 0)),
                  pl.BlockSpec((P, Npad), lambda i: (0, 0))],
        out_specs=pl.BlockSpec((tm, Npad), lambda i: (i, 0)),
        compiler_params=pltpu.CompilerParams(
            dimension_semantics=("parallel",)),
    )(a.astype(compute_dtype), b.astype(compute_dtype), add)
    return out[:M, :N]


# ----------------------------------------------------------------------------
# Pallas kernel 2: fused range branch = crop-mask + 1x1-conv encoder + pos-embed
#   (replaces the standalone lane-hostile crop_mask kernel)
# ----------------------------------------------------------------------------
def _range_encode_kernel(rp_ref, ri_ref, w_ref, pos_ref, feat_ref, rpm_ref, *, tr):
    rp = rp_ref[...]                                        # (tm, 3) f32
    x = rp[:, 0:1]
    y = rp[:, 1:2]
    z = rp[:, 2:3]
    m = ((x > tr[0]) & (x < tr[3]) &
         (y > tr[1]) & (y < tr[4]) &
         (z > tr[2]) & (z < tr[5])).astype(jnp.float32)     # (tm, 1)
    rpm_ref[...] = rp * m                                   # mask.unsqueeze(-1)
    ri = ri_ref[...] * m                                    # mask.unsqueeze(1)
    feat_ref[...] = (jnp.dot(ri.astype(w_ref.dtype), w_ref[...],
                             preferred_element_type=jnp.float32) + pos_ref[...])


def range_encode_pallas(rp_flat, ri_flat, w, pos, triplane_range, tile_rows,
                        compute_dtype=jnp.bfloat16):
    """rp_flat (M,3), ri_flat (M,Cin) channels-last, w (Cin,D), pos (tile_rows,D).
    Returns (features (M,D) f32, masked range points (M,3) f32)."""
    M, Cin = ri_flat.shape
    D = w.shape[1]
    assert M % tile_rows == 0 and tile_rows % 8 == 0 and D % 128 == 0
    assert pos.shape == (tile_rows, D)
    kernel = functools.partial(_range_encode_kernel,
                               tr=tuple(float(v) for v in triplane_range))
    return pl.pallas_call(
        kernel,
        out_shape=(jax.ShapeDtypeStruct((M, D), jnp.float32),
                   jax.ShapeDtypeStruct((M, 3), jnp.float32)),
        grid=(M // tile_rows,),
        in_specs=[pl.BlockSpec((tile_rows, 3), lambda i: (i, 0)),
                  pl.BlockSpec((tile_rows, Cin), lambda i: (i, 0)),
                  pl.BlockSpec((Cin, D), lambda i: (0, 0)),
                  pl.BlockSpec((tile_rows, D), lambda i: (0, 0))],
        out_specs=(pl.BlockSpec((tile_rows, D), lambda i: (i, 0)),
                   pl.BlockSpec((tile_rows, 3), lambda i: (i, 0))),
        compiler_params=pltpu.CompilerParams(
            dimension_semantics=("parallel",)),
    )(rp_flat.astype(jnp.float32), ri_flat.astype(jnp.float32),
      w.astype(compute_dtype), pos.astype(jnp.float32))


# ----------------------------------------------------------------------------
# Pallas kernel 3: separable triplane bilinear grid-sample
#   (F.grid_sample, zeros padding, align_corners=False, three planes summed)
#   weight(col) = max(0, 1 - |col - pix|): identical to the two-neighbor
#   bilinear weights and gives zeros padding for free.
#   Step 1 (MXU): plane (C*H, W) @ w_lane (W, TN)  -> (C*H, TN)   [M = C*H]
#   Step 2 (VPU/XLU): weighted sum over H with w_sub (H, TN)      -> (C, TN)
# ----------------------------------------------------------------------------
def _tri_sample_kernel(tri_ref, g_ref, o_ref, *, C, H, W):
    TN = g_ref.shape[-1]
    g = g_ref[...]                        # (3, TN) normalized coords in [-1, 1]
    gx = g[0:1, :]
    gy = g[1:2, :]
    gz = g[2:3, :]

    def wmat(coord, size):
        # weight math kept in f32 (exact coords, v5e has no bf16 VALU)
        pix = ((coord + 1.0) * size - 1.0) * 0.5            # (1, TN)
        idx = jax.lax.broadcasted_iota(jnp.float32, (size, TN), 0)
        return jnp.maximum(0.0, 1.0 - jnp.abs(idx - pix))   # (size, TN)

    wx_l = wmat(gx, W)        # lane (W-axis) weights from x   -> planes 0, 2
    wy_l = wmat(gy, W)        # lane (W-axis) weights from y   -> plane 1
    wy_s = wmat(gy, H)        # sublane (H-axis) weights from y -> plane 0
    wz_s = wmat(gz, H)        # sublane (H-axis) weights from z -> planes 1, 2

    def plane_sample(p, w_lane, w_sub):
        plane = tri_ref[p]                                   # (C*H, W)
        tmp = jnp.dot(plane, w_lane.astype(plane.dtype),
                      preferred_element_type=jnp.float32)    # (C*H, TN)
        tmp = tmp.reshape(C, H, TN)
        return jnp.sum(tmp * w_sub[None, :, :], axis=1)      # (C, TN)

    o_ref[...] = (plane_sample(0, wx_l, wy_s) +              # grid[..., [0, 1]]
                  plane_sample(1, wy_l, wz_s) +              # grid[..., [1, 2]]
                  plane_sample(2, wx_l, wz_s))               # grid[..., [0, 2]]


def sample_points_triplane_pallas(triplane, grid_norm, tile_n=1024,
                                  compute_dtype=jnp.bfloat16):
    """triplane: (B, 3, C, H, W); grid_norm: (B, N, 3) in [-1, 1] -> (B, C, N)."""
    B, _, C, H, W = triplane.shape
    N = grid_norm.shape[1]
    assert (C * H) % 8 == 0

    # lane-dense point layout + explicit padding so the grid always tiles
    tile_n = max(128, min(tile_n, _round_up(N, 128)))
    Npad = _round_up(N, tile_n)
    g = jnp.transpose(grid_norm, (0, 2, 1)).astype(jnp.float32)   # (B, 3, N)
    if Npad != N:
        # padded points land outside every plane -> all-zero weights
        g = jnp.pad(g, ((0, 0), (0, 0), (0, Npad - N)), constant_values=-2.0)

    tri2d = triplane.reshape(B, 3, C * H, W).astype(compute_dtype)
    kernel = functools.partial(_tri_sample_kernel, C=C, H=H, W=W)
    out = pl.pallas_call(
        kernel,
        out_shape=jax.ShapeDtypeStruct((B, C, Npad), jnp.float32),
        grid=(B, Npad // tile_n),
        in_specs=[pl.BlockSpec((None, 3, C * H, W), lambda b, n: (b, 0, 0, 0)),
                  pl.BlockSpec((None, 3, tile_n), lambda b, n: (b, 0, n))],
        out_specs=pl.BlockSpec((None, C, tile_n), lambda b, n: (b, 0, n)),
        compiler_params=pltpu.CompilerParams(
            dimension_semantics=("parallel", "parallel")),
    )(tri2d, g)
    return out[:, :, :N]


# ----------------------------------------------------------------------------
# Pure-JAX reference for the grid-sample kernel (correctness check only)
# ----------------------------------------------------------------------------
def _grid_sample_ref(plane, gx, gy):
    C, H, W = plane.shape
    ix = ((gx + 1.0) * W - 1.0) * 0.5
    iy = ((gy + 1.0) * H - 1.0) * 0.5
    x0 = jnp.floor(ix)
    x1 = x0 + 1.0
    y0 = jnp.floor(iy)
    y1 = y0 + 1.0
    wx1, wx0 = ix - x0, 1.0 - (ix - x0)
    wy1, wy0 = iy - y0, 1.0 - (iy - y0)

    def gather(yi, xi):
        valid = (xi >= 0) & (xi < W) & (yi >= 0) & (yi < H)
        xi_c = jnp.clip(xi, 0, W - 1).astype(jnp.int32)
        yi_c = jnp.clip(yi, 0, H - 1).astype(jnp.int32)
        return plane[:, yi_c, xi_c] * valid.astype(plane.dtype)[None]

    return (gather(y0, x0) * (wy0 * wx0)[None] + gather(y0, x1) * (wy0 * wx1)[None] +
            gather(y1, x0) * (wy1 * wx0)[None] + gather(y1, x1) * (wy1 * wx1)[None])


def sample_points_triplane_ref(triplane, grid_norm):
    outs = []
    for b in range(triplane.shape[0]):
        gx, gy, gz = grid_norm[b, :, 0], grid_norm[b, :, 1], grid_norm[b, :, 2]
        outs.append(_grid_sample_ref(triplane[b, 0], gx, gy) +
                    _grid_sample_ref(triplane[b, 1], gy, gz) +
                    _grid_sample_ref(triplane[b, 2], gx, gz))
    return jnp.stack(outs)


# ----------------------------------------------------------------------------
# TriplaneOcc (Pallas version)
# ----------------------------------------------------------------------------
class TriplaneOccPallas:
    def __init__(self, voxel_size, occ_range, triplane_range, triplane_voxel_size,
                 class_names, tri_channels=8, embed_dim=768, range_in_ch=5,
                 img_in_ch=3, compute_dtype=jnp.bfloat16, seed=0):
        self.voxel_size = voxel_size
        self.occ_range = occ_range
        self.triplane_range = triplane_range
        self.triplane_voxel_size = triplane_voxel_size
        self.class_names = class_names
        self.num_classes = len(class_names) + 1
        self.tri_channels = tri_channels
        self.embed_dim = embed_dim
        self.compute_dtype = compute_dtype

        # Deterministic synthetic parameters (encoder/neck/decoder stand-ins).
        key = jax.random.PRNGKey(seed)
        k1, k2, k3, k4, k5 = jax.random.split(key, 5)
        self.w_range = 0.02 * jax.random.normal(k1, (range_in_ch, embed_dim), jnp.float32)
        self.w_img = 0.02 * jax.random.normal(k2, (img_in_ch, embed_dim), jnp.float32)
        self.w_neck = 0.02 * jax.random.normal(k3, (embed_dim, 3 * tri_channels), jnp.float32)
        self.w_dec = 0.5 * jax.random.normal(k4, (tri_channels, self.num_classes), jnp.float32)
        self.b_dec = 0.01 * jax.random.normal(k5, (self.num_classes,), jnp.float32)

        self.occ_bounds, self.ref_3d = self.roi()

    # ---- faithful reimplementation of TriplaneOcc.roi ----
    def roi(self):
        min_x = int((abs(-50 - self.occ_range[0]) + 0.5) / self.voxel_size[0])
        min_y = int((abs(-50 - self.occ_range[1]) + 0.5) / self.voxel_size[1])
        max_x = int((abs(50 - self.occ_range[0]) - 0.5) / self.voxel_size[0])
        max_y = int((abs(50 - self.occ_range[1]) - 0.5) / self.voxel_size[1])
        X = max_x - min_x + 1
        Y = max_y - min_y + 1
        Z = int((self.occ_range[5] - self.occ_range[2]) / self.voxel_size[2])
        xs = np.broadcast_to(np.arange(X, dtype=np.float32).reshape(X, 1, 1), (X, Y, Z))
        ys = np.broadcast_to(np.arange(Y, dtype=np.float32).reshape(1, Y, 1), (X, Y, Z))
        zs = np.broadcast_to(np.arange(Z, dtype=np.float32).reshape(1, 1, Z), (X, Y, Z))
        ref_3d = np.stack((xs, ys, zs), -1).copy()
        ref_3d[..., 0] = (ref_3d[..., 0] + 0.5) * self.voxel_size[0] + self.occ_range[0]
        ref_3d[..., 1] = (ref_3d[..., 1] + 0.5) * self.voxel_size[1] + self.occ_range[1]
        ref_3d[..., 2] = (ref_3d[..., 2] + 0.5) * self.voxel_size[2] + self.occ_range[2]
        return (min_x, min_y, max_x, max_y), jnp.asarray(ref_3d)

    # ---- faithful reimplementation of sample_points_triplane (Pallas inside) ----
    def sample_points_triplane(self, triplane, points):
        tr, tv = self.triplane_range, self.triplane_voxel_size
        vc = jnp.stack([(points[..., 0] - tr[0]) / tv[0],
                        (points[..., 1] - tr[1]) / tv[1],
                        (points[..., 2] - tr[2]) / tv[2]], axis=-1)
        # NOTE: torch normalizes all 3 axes by plane W/2 (square-plane assumption)
        vc = vc / (triplane.shape[-1] / 2) - 1.0
        b, h, w, d, p = vc.shape
        vc_flat = vc.reshape(b, h * w * d, p)
        feat = sample_points_triplane_pallas(triplane, vc_flat,
                                             compute_dtype=self.compute_dtype)
        return feat.reshape(b, -1, h, w, d), vc_flat

    def forward(self, img, range_image, range_points, occupancy):
        B, Ncam, Cim, Hc, Wc = img.shape
        _, Cr, Hr, Wr = range_image.shape
        assert Wr == Wc, "NCHW concat along H requires equal widths"
        D = self.embed_dim
        cd = self.compute_dtype

        # 2D sincos positional embeddings (same helper as torch path)
        range_pos = jnp.asarray(get_2d_sincos_pos_embed(D, (Hr, Wr)))   # (Hr*Wr, D)
        cam_pos = jnp.asarray(get_2d_sincos_pos_embed(D, (Hc, Wc)))     # (Hc*Wc, D)

        # 1-3) range branch: crop-mask + 1x1-conv encoder + pos-embed, fused (Pallas)
        # TODO(synk): real encoder is a config-built backbone (range + image branches).
        rp_flat = range_points.reshape(B * Hr * Wr, 3)
        ri_flat = jnp.transpose(range_image, (0, 2, 3, 1)).reshape(B * Hr * Wr, Cr)
        range_feat_flat, rp_masked = range_encode_pallas(
            rp_flat, ri_flat, self.w_range, range_pos, self.triplane_range,
            tile_rows=Hr * Wr, compute_dtype=cd)
        rp_masked = rp_masked.reshape(B, Hr, Wr, 3)

        # image branch: one batched 1x1-conv matmul over all B*Ncam maps + pos-embed
        img_flat = jnp.transpose(img, (0, 1, 3, 4, 2)).reshape(B * Ncam * Hc * Wc, Cim)
        img_feat_flat = pallas_matmul(img_flat, self.w_img, add=cam_pos,
                                      tm=Hc * Wc, compute_dtype=cd)

        # 4) combine modalities: cat along H in NCHW == row-concat of (h, w) slabs
        range_feat = range_feat_flat.reshape(B, Hr * Wr, D)
        img_feat = img_feat_flat.reshape(B, Ncam * Hc * Wc, D)
        combined = jnp.concatenate([range_feat, img_feat], axis=1)      # (B, Ht*Wt, D)
        Ht, Wt = Hr + Ncam * Hc, Wr

        # 5) neck stand-in: 1x1 conv D -> 3*tri_channels (single tiled Pallas matmul)
        # TODO(synk): real neck is a config-built module mapping features to triplane.
        comb_flat = combined.reshape(B * Ht * Wt, D)
        tri_flat = pallas_matmul(comb_flat, self.w_neck, tm=128, compute_dtype=cd)
        triplane = jnp.transpose(
            tri_flat.reshape(B, Ht, Wt, 3 * self.tri_channels),
            (0, 3, 1, 2)).reshape(B, 3, self.tri_channels, Ht, Wt)

        # 6) triplane bilinear sampling (Pallas separable grid-sample)
        ref_3d = jnp.broadcast_to(self.ref_3d[None], (B,) + self.ref_3d.shape)
        voxel_feat, grid_norm = self.sample_points_triplane(triplane, ref_3d)

        # 7) ground-truth ROI slice
        ob = self.occ_bounds
        occ = occupancy[:, ob[0]:ob[2] + 1, ob[1]:ob[3] + 1]

        # 8) decoder stand-in: per-voxel linear (lane-padded, fused bias) + CE loss
        # TODO(synk): real decoder head / loss come from the config.
        Bv, Cv, X, Y, Z = voxel_feat.shape
        vox_flat = jnp.transpose(voxel_feat, (0, 2, 3, 4, 1)).reshape(-1, Cv)
        logits = pallas_matmul(vox_flat, self.w_dec, add=self.b_dec, tm=512,
                               compute_dtype=cd)
        pred = jnp.transpose(logits.reshape(Bv, X, Y, Z, self.num_classes),
                             (0, 4, 1, 2, 3))                # (B, n_cls, X, Y, Z)

        # cross-entropy with ignore_index=255
        logp = jax.nn.log_softmax(pred, axis=1)
        valid = occ != 255
        tgt = jnp.where(valid, occ, 0).astype(jnp.int32)
        nll = -jnp.take_along_axis(logp, tgt[:, None], axis=1)[:, 0]
        loss = (nll * valid).sum() / jnp.maximum(valid.sum(), 1)

        aux = dict(triplane=triplane, voxel_feat=voxel_feat, grid_norm=grid_norm,
                   pred=pred, range_points_masked=rp_masked)
        return {"loss": loss}, aux


# ----------------------------------------------------------------------------
# main
# ----------------------------------------------------------------------------
if __name__ == "__main__":
    key = jax.random.PRNGKey(0)
    k_img, k_ri, k_rpxy, k_rpz, k_occ, k_ign, k_a, k_b = jax.random.split(key, 8)

    # small shapes: B=1, 1 camera, 3-ch image, 5-ch range image, 8x16 spatial
    B, Ncam, Hc, Wc = 1, 1, 8, 16
    img = jax.random.normal(k_img, (B, Ncam, 3, Hc, Wc), jnp.float32)
    range_image = jax.random.normal(k_ri, (B, 5, 8, 16), jnp.float32)
    rp_xy = jax.random.uniform(k_rpxy, (B, 8, 16, 2), minval=-9.0, maxval=9.0)
    rp_z = jax.random.uniform(k_rpz, (B, 8, 16, 1), minval=-2.5, maxval=2.5)
    range_points = jnp.concatenate([rp_xy, rp_z], axis=-1)

    class_names = ["car", "pedestrian", "cyclist", "truck"]     # 4 + free = 5 classes
    occupancy = jax.random.randint(k_occ, (B, 64, 64, 8), 0, 5, jnp.int32)
    ignore = jax.random.uniform(k_ign, (B, 64, 64, 8)) < 0.1
    occupancy = jnp.where(ignore, 255, occupancy)

    model = TriplaneOccPallas(
        voxel_size=[1.0, 1.0, 0.5],
        occ_range=[-8.0, -8.0, -2.0, 8.0, 8.0, 2.0],
        triplane_range=[-8.0, -8.0, -2.0, 8.0, 8.0, 2.0],
        triplane_voxel_size=[1.0, 1.0, 0.25],
        class_names=class_names,
        tri_channels=8,
        embed_dim=768,
    )

    losses, aux = model.forward(img, range_image, range_points, occupancy)
    loss = jax.block_until_ready(losses["loss"])
    assert jnp.isfinite(loss)

    # sanity-check the separable Pallas grid-sample (f32 path) against the
    # pure-JAX gather reference
    tri = aux["triplane"]
    grid_norm = aux["grid_norm"]
    pallas_feat = sample_points_triplane_pallas(tri, grid_norm,
                                                compute_dtype=jnp.float32)
    ref_feat = sample_points_triplane_ref(tri, grid_norm)
    np.testing.assert_allclose(np.asarray(pallas_feat), np.asarray(ref_feat),
                               rtol=1e-3, atol=1e-3)

    # sanity-check the tiled matmul + fused bias (exercises M/N padding paths)
    a = jax.random.normal(k_a, (100, 7), jnp.float32)
    w = jax.random.normal(k_b, (7, 20), jnp.float32)
    bias = jnp.arange(20, dtype=jnp.float32)
    got = pallas_matmul(a, w, add=bias, tm=64, compute_dtype=jnp.float32)
    want = jnp.dot(a, w, precision=jax.lax.Precision.HIGHEST) + bias
    np.testing.assert_allclose(np.asarray(got), np.asarray(want),
                               rtol=1e-3, atol=1e-3)

    print("KERNEL_OK")
</pallas_src>

<mosaic_0001>
module attributes {stable_mosaic.version = 11 : i64} {
  func.func @_range_encode_kernel(%arg0: i32, %arg1: memref<128x3xf32, #tpu.memory_space<vmem>>, %arg2: memref<128x5xf32, #tpu.memory_space<vmem>>, %arg3: memref<5x768xbf16, #tpu.memory_space<vmem>>, %arg4: memref<128x768xf32, #tpu.memory_space<vmem>>, %arg5: memref<128x768xf32, #tpu.memory_space<vmem>>, %arg6: memref<128x3xf32, #tpu.memory_space<vmem>>) attributes {dimension_semantics = [#tpu.dimension_semantics<parallel>], iteration_bounds = array<i64: 1>, scalar_prefetch = 0 : i64, scratch_operands = 0 : i64, tpu.core_type = #tpu.core_type<tc>, window_params = [{transform_indices = @transform_0, window_bounds = array<i64: 128, 3>}, {transform_indices = @transform_1, window_bounds = array<i64: 128, 5>}, {pipeline_mode = #tpu.pipeline_mode<synchronous>, transform_indices = @transform_2, window_bounds = array<i64: 5, 768>}, {pipeline_mode = #tpu.pipeline_mode<synchronous>, transform_indices = @transform_3, window_bounds = array<i64: 128, 768>}, {transform_indices = @transform_4, window_bounds = array<i64: 128, 768>}, {transform_indices = @transform_5, window_bounds = array<i64: 128, 3>}]} {
    %c0 = arith.constant 0 : index
    %c0_0 = arith.constant 0 : index
    %0 = vector.load %arg1[%c0, %c0_0] : memref<128x3xf32, #tpu.memory_space<vmem>>, vector<128x3xf32>
    %1 = vector.extract_strided_slice %0 {offsets = [0, 0], sizes = [128, 1], strides = [1, 1]} : vector<128x3xf32> to vector<128x1xf32>
    %2 = vector.extract_strided_slice %0 {offsets = [0, 1], sizes = [128, 1], strides = [1, 1]} : vector<128x3xf32> to vector<128x1xf32>
    %3 = vector.extract_strided_slice %0 {offsets = [0, 2], sizes = [128, 1], strides = [1, 1]} : vector<128x3xf32> to vector<128x1xf32>
    %cst = arith.constant -8.000000e+00 : f32
    %4 = vector.broadcast %cst : f32 to vector<128x1xf32>
    %5 = arith.cmpf ogt, %1, %4 : vector<128x1xf32>
    %cst_1 = arith.constant 8.000000e+00 : f32
    %6 = vector.broadcast %cst_1 : f32 to vector<128x1xf32>
    %7 = arith.cmpf olt, %1, %6 : vector<128x1xf32>
    %8 = arith.andi %5, %7 : vector<128x1xi1>
    %cst_2 = arith.constant -8.000000e+00 : f32
    %9 = vector.broadcast %cst_2 : f32 to vector<128x1xf32>
    %10 = arith.cmpf ogt, %2, %9 : vector<128x1xf32>
    %11 = arith.andi %8, %10 : vector<128x1xi1>
    %cst_3 = arith.constant 8.000000e+00 : f32
    %12 = vector.broadcast %cst_3 : f32 to vector<128x1xf32>
    %13 = arith.cmpf olt, %2, %12 : vector<128x1xf32>
    %14 = arith.andi %11, %13 : vector<128x1xi1>
    %cst_4 = arith.constant -2.000000e+00 : f32
    %15 = vector.broadcast %cst_4 : f32 to vector<128x1xf32>
    %16 = arith.cmpf ogt, %3, %15 : vector<128x1xf32>
    %17 = arith.andi %14, %16 : vector<128x1xi1>
    %cst_5 = arith.constant 2.000000e+00 : f32
    %18 = vector.broadcast %cst_5 : f32 to vector<128x1xf32>
    %19 = arith.cmpf olt, %3, %18 : vector<128x1xf32>
    %20 = arith.andi %17, %19 : vector<128x1xi1>
    %21 = arith.extui %20 : vector<128x1xi1> to vector<128x1xi32>
    %22 = arith.sitofp %21 : vector<128x1xi32> to vector<128x1xf32>
    %23 = vector.broadcast %22 : vector<128x1xf32> to vector<128x3xf32>
    %24 = arith.mulf %0, %23 : vector<128x3xf32>
    %c0_6 = arith.constant 0 : index
    %c0_7 = arith.constant 0 : index
    %25 = vector.load %arg6[%c0_6, %c0_7] : memref<128x3xf32, #tpu.memory_space<vmem>>, vector<128x3xf32>
    tpu.vector_store %arg6[%c0_6, %c0_7], %24 {strides = array<i32>} : memref<128x3xf32, #tpu.memory_space<vmem>>, vector<128x3xf32>,
    %c0_8 = arith.constant 0 : index
    %c0_9 = arith.constant 0 : index
    %26 = vector.load %arg2[%c0_8, %c0_9] : memref<128x5xf32, #tpu.memory_space<vmem>>, vector<128x5xf32>
    %27 = vector.broadcast %22 : vector<128x1xf32> to vector<128x5xf32>
    %28 = arith.mulf %26, %27 : vector<128x5xf32>
    %29 = arith.truncf %28 : vector<128x5xf32> to vector<128x5xbf16>
    %c0_10 = arith.constant 0 : index
    %c0_11 = arith.constant 0 : index
    %30 = vector.load %arg3[%c0_10, %c0_11] : memref<5x768xbf16, #tpu.memory_space<vmem>>, vector<5x768xbf16>
    %cst_12 = arith.constant dense<0.000000e+00> : vector<128x768xf32>
    %31 = tpu.matmul %29, %30, %cst_12 {dimension_numbers = #tpu.dot_dimension_numbers<[1], [0], [0], [1], [0, 0, 1, 1], [], []>} : vector<128x5xbf16>, vector<5x768xbf16>, vector<128x768xf32> -> vector<128x768xf32>
    %c0_13 = arith.constant 0 : index
    %c0_14 = arith.constant 0 : index
    %32 = vector.load %arg4[%c0_13, %c0_14] : memref<128x768xf32, #tpu.memory_space<vmem>>, vector<128x768xf32>
    %33 = arith.addf %31, %32 : vector<128x768xf32>
    %c0_15 = arith.constant 0 : index
    %c0_16 = arith.constant 0 : index
    %34 = vector.load %arg5[%c0_15, %c0_16] : memref<128x768xf32, #tpu.memory_space<vmem>>, vector<128x768xf32>
    tpu.vector_store %arg5[%c0_15, %c0_16], %33 {strides = array<i32>} : memref<128x768xf32, #tpu.memory_space<vmem>>, vector<128x768xf32>,
    return
  }
  func.func @transform_0(%arg0: i32) -> (i32, i32) {
    %c0_i32 = arith.constant 0 : i32
    %c0_i32_0 = arith.constant 0 : i32
    return %arg0, %c0_i32 : i32, i32
  }
  func.func @transform_1(%arg0: i32) -> (i32, i32) {
    %c0_i32 = arith.constant 0 : i32
    %c0_i32_0 = arith.constant 0 : i32
    return %arg0, %c0_i32 : i32, i32
  }
  func.func @transform_2(%arg0: i32) -> (i32, i32) {
    %c0_i32 = arith.constant 0 : i32
    %c0_i32_0 = arith.constant 0 : i32
    %c0_i32_1 = arith.constant 0 : i32
    return %c0_i32, %c0_i32_0 : i32, i32
  }
  func.func @transform_3(%arg0: i32) -> (i32, i32) {
    %c0_i32 = arith.constant 0 : i32
    %c0_i32_0 = arith.constant 0 : i32
    %c0_i32_1 = arith.constant 0 : i32
    return %c0_i32, %c0_i32_0 : i32, i32
  }
  func.func @transform_4(%arg0: i32) -> (i32, i32) {
    %c0_i32 = arith.constant 0 : i32
    %c0_i32_0 = arith.constant 0 : i32
    return %arg0, %c0_i32 : i32, i32
  }
  func.func @transform_5(%arg0: i32) -> (i32, i32) {
    %c0_i32 = arith.constant 0 : i32
    %c0_i32_0 = arith.constant 0 : i32
    return %arg0, %c0_i32 : i32, i32
  }
}

</mosaic_0001>

<llo_original>
// kernel: tpu_custom_call.1
$region0: #{tpu_custom_call.1}
  #allocation0 [shape = 'u32[]', space=smem, size = 0x4, offset = 0x4, fixed_abs, tag = 'smem constant byte address 0x4 - core index']
  #allocation1 [shape = 'u32[72,128]{1,0:T(1,128)}', space=vmem, size = 0x9000, scoped, tag = 'internal scratch']
  %s0 = inlined_call_operand.vmem [shape: f32[128,3], index: 0, kind: input, shape index: {}]
  %s1 = inlined_call_operand.vmem [shape: f32[128,5], index: 1, kind: input, shape index: {}]
  %s2 = inlined_call_operand.vmem [shape: bf16[5,768], index: 2, kind: input, shape index: {}]
  %s3 = inlined_call_operand.hbm [shape: f32[128,768], index: 3, kind: input, shape index: {}]
  %s4 = inlined_call_operand.hbm [shape: f32[128,768], index: 4, kind: output, shape index: {0}]
  %s5 = inlined_call_operand.vmem [shape: f32[128,3], index: 5, kind: output, shape index: {1}]
  %6 = xla_tuple %s4, %s5
  %s7 = sld [smem:[#allocation0]]
  $region38: #{tpu_custom_call.1} parent=0
    _
  %s9 = ssub.s32 1, %s7
  %s10 = scalar_select 0, %s9, %s7
  $region1: #{tpu_custom_call.1} parent=0
    #allocation2 [shape = 'u8[393216]{0}', space=vmem, size = 0x60000, scoped, tag = 'input window, operand 3, single buffered']
    #allocation3 [shape = 's32[1]{0}', space=sflag, size = 0x4, scoped, tag = 'scoped memory for tpu_custom_call.1']
    #allocation4 [shape = 's32[1]{0}', space=sflag, size = 0x4, scoped, tag = 'scoped memory for tpu_custom_call.1']
    #allocation5 [shape = 'u8[393216]{0}', space=vmem, size = 0x60000, scoped, tag = 'output window, operand 0, single buffered']
    %11 = vsyncpa [#allocation3], 0
    %12 = vsyncpa [#allocation4], 0
    // Predicated region
    $region2: #{tpu_custom_call.1} parent=1 // pred_check
      _
    $region3: #{tpu_custom_call.1} parent=1 // pred_check_branch
      %14 = sbr.rel (0) target = $region5
    $region4: #{tpu_custom_call.1} parent=1 // pred_region
      _
    $region5: #{tpu_custom_call.1} parent=1 // pred_fallthru
      _
    // Predicated region
    $region6: #{tpu_custom_call.1} parent=1 // pred_check
      _
    $region7: #{tpu_custom_call.1} parent=1 // pred_check_branch
      %16 = sbr.rel (0) target = $region9
    $region8: #{tpu_custom_call.1} parent=1 // pred_region
      _
    $region9: #{tpu_custom_call.1} parent=1 // pred_fallthru
      _
    // Predicated region
    $region10: #{tpu_custom_call.1} parent=1 // pred_check
      _
    $region11: #{tpu_custom_call.1} parent=1 // pred_check_branch
      %18 = sbr.rel (0) target = $region13
    $region12: #{tpu_custom_call.1} parent=1 // pred_region
      _
    $region13: #{tpu_custom_call.1} parent=1 // pred_fallthru
      _
    // Predicated region
    $region14: #{tpu_custom_call.1} parent=1 // pred_check
      _
    $region15: #{tpu_custom_call.1} parent=1 // pred_check_branch
      %20 = sbr.rel (0) target = $region17
    $region16: #{tpu_custom_call.1} parent=1 // pred_region
      %22 = vsyncadd [#allocation3], 0
      %s23 = sshll.u32 %s3, 4
      %s24 = int_to_ptr.hbm [resolvable:$true] %s23
      %s25 = sshll.u32 [#allocation2], 4
      %s26 = int_to_ptr.vmem [resolvable:$true] %s25
      %31 = dma.hbm_to_vmem [thread:$0]  %s24, 12288, %s26, [#allocation3], 768, 768, 48
    $region17: #{tpu_custom_call.1} parent=1 // pred_fallthru
      _
    // Predicated region
    $region18: #{tpu_custom_call.1} parent=1 // pred_check
      _
    $region19: #{tpu_custom_call.1} parent=1 // pred_check_branch
      %33 = sbr.rel (0) target = $region21
    $region20: #{tpu_custom_call.1} parent=1 // pred_region
      %35 = dma.done [#allocation3], 12288
    $region21: #{tpu_custom_call.1} parent=1 // pred_fallthru
      _
    %v37 = vld [vmem:[%s0] sm:$0xff]
    %v38 = vld [vmem:[%s0 + $0x8] sm:$0xff]
    %v39 = vld [vmem:[%s0 + $0x10] sm:$0xff]
    %v40 = vld [vmem:[%s0 + $0x18] sm:$0xff]
    %v41 = vld [vmem:[%s0 + $0x20] sm:$0xff]
    %v42 = vld [vmem:[%s0 + $0x28] sm:$0xff]
    %v43 = vld [vmem:[%s0 + $0x30] sm:$0xff]
    %v44 = vld [vmem:[%s0 + $0x38] sm:$0xff]
    %v45 = vld [vmem:[%s0 + $0x40] sm:$0xff]
    %v46 = vld [vmem:[%s0 + $0x48] sm:$0xff]
    %v47 = vld [vmem:[%s0 + $0x50] sm:$0xff]
    %v48 = vld [vmem:[%s0 + $0x58] sm:$0xff]
    %v49 = vld [vmem:[%s0 + $0x60] sm:$0xff]
    %v50 = vld [vmem:[%s0 + $0x68] sm:$0xff]
    %v51 = vld [vmem:[%s0 + $0x70] sm:$0xff]
    %v52 = vld [vmem:[%s0 + $0x78] sm:$0xff]
    %vm53 = vcmp.gt.f32.partialorder %v37, -8.0
    %vm54 = vcmp.gt.f32.partialorder %v38, -8.0
    %vm55 = vcmp.gt.f32.partialorder %v39, -8.0
    %vm56 = vcmp.gt.f32.partialorder %v40, -8.0
    %vm57 = vcmp.gt.f32.partialorder %v41, -8.0
    %vm58 = vcmp.gt.f32.partialorder %v42, -8.0
    %vm59 = vcmp.gt.f32.partialorder %v43, -8.0
    %vm60 = vcmp.gt.f32.partialorder %v44, -8.0
    %vm61 = vcmp.gt.f32.partialorder %v45, -8.0
    %vm62 = vcmp.gt.f32.partialorder %v46, -8.0
    %vm63 = vcmp.gt.f32.partialorder %v47, -8.0
    %vm64 = vcmp.gt.f32.partialorder %v48, -8.0
    %vm65 = vcmp.gt.f32.partialorder %v49, -8.0
    %vm66 = vcmp.gt.f32.partialorder %v50, -8.0
    %vm67 = vcmp.gt.f32.partialorder %v51, -8.0
    %vm68 = vcmp.gt.f32.partialorder %v52, -8.0
    %vm69 = vcmp.lt.f32.partialorder %v37, 8.0
    %vm70 = vcmp.lt.f32.partialorder %v38, 8.0
    %vm71 = vcmp.lt.f32.partialorder %v39, 8.0
    %vm72 = vcmp.lt.f32.partialorder %v40, 8.0
    %vm73 = vcmp.lt.f32.partialorder %v41, 8.0
    %vm74 = vcmp.lt.f32.partialorder %v42, 8.0
    %vm75 = vcmp.lt.f32.partialorder %v43, 8.0
    %vm76 = vcmp.lt.f32.partialorder %v44, 8.0
    %vm77 = vcmp.lt.f32.partialorder %v45, 8.0
    %vm78 = vcmp.lt.f32.partialorder %v46, 8.0
    %vm79 = vcmp.lt.f32.partialorder %v47, 8.0
    %vm80 = vcmp.lt.f32.partialorder %v48, 8.0
    %vm81 = vcmp.lt.f32.partialorder %v49, 8.0
    %vm82 = vcmp.lt.f32.partialorder %v50, 8.0
    %vm83 = vcmp.lt.f32.partialorder %v51, 8.0
    %vm84 = vcmp.lt.f32.partialorder %v52, 8.0
    %vm85 = vmand %vm53, %vm69
    %vm86 = vmand %vm54, %vm70
    %vm87 = vmand %vm55, %vm71
    %vm88 = vmand %vm56, %vm72
    %vm89 = vmand %vm57, %vm73
    %vm90 = vmand %vm58, %vm74
    %vm91 = vmand %vm59, %vm75
    %vm92 = vmand %vm60, %vm76
    %vm93 = vmand %vm61, %vm77
    %vm94 = vmand %vm62, %vm78
    %vm95 = vmand %vm63, %vm79
    %vm96 = vmand %vm64, %vm80
    %vm97 = vmand %vm65, %vm81
    %vm98 = vmand %vm66, %vm82
    %vm99 = vmand %vm67, %vm83
    %vm100 = vmand %vm68, %vm84
    %v101 = vsel %vm53, 1, 0
    %v102 = vsel %vm54, 1, 0
    %v103 = vsel %vm55, 1, 0
    %v104 = vsel %vm56, 1, 0
    %v105 = vsel %vm57, 1, 0
    %v106 = vsel %vm58, 1, 0
    %v107 = vsel %vm59, 1, 0
    %v108 = vsel %vm60, 1, 0
    %v109 = vsel %vm61, 1, 0
    %v110 = vsel %vm62, 1, 0
    %v111 = vsel %vm63, 1, 0
    %v112 = vsel %vm64, 1, 0
    %v113 = vsel %vm65, 1, 0
    %v114 = vsel %vm66, 1, 0
    %v115 = vsel %vm67, 1, 0
    %v116 = vsel %vm68, 1, 0
    %117 = vrot.lane.b32.xlu0 %v101, 127
    %v118 = vpop.permute.xlu0 %117
    %119 = vrot.lane.b32.xlu0 %v102, 127
    %v120 = vpop.permute.xlu0 %119
    %121 = vrot.lane.b32.xlu0 %v103, 127
    %v122 = vpop.permute.xlu0 %121
    %123 = vrot.lane.b32.xlu0 %v104, 127
    %v124 = vpop.permute.xlu0 %123
    %125 = vrot.lane.b32.xlu0 %v105, 127
    %v126 = vpop.permute.xlu0 %125
    %127 = vrot.lane.b32.xlu0 %v106, 127
    %v128 = vpop.permute.xlu0 %127
    %129 = vrot.lane.b32.xlu0 %v107, 127
    %v130 = vpop.permute.xlu0 %129
    %131 = vrot.lane.b32.xlu0 %v108, 127
    %v132 = vpop.permute.xlu0 %131
    %133 = vrot.lane.b32.xlu0 %v109, 127
    %v134 = vpop.permute.xlu0 %133
    %135 = vrot.lane.b32.xlu0 %v110, 127
    %v136 = vpop.permute.xlu0 %135
    %137 = vrot.lane.b32.xlu0 %v111, 127
    %v138 = vpop.permute.xlu0 %137
    %139 = vrot.lane.b32.xlu0 %v112, 127
    %v140 = vpop.permute.xlu0 %139
    %141 = vrot.lane.b32.xlu0 %v113, 127
    %v142 = vpop.permute.xlu0 %141
    %143 = vrot.lane.b32.xlu0 %v114, 127
    %v144 = vpop.permute.xlu0 %143
    %145 = vrot.lane.b32.xlu0 %v115, 127
    %v146 = vpop.permute.xlu0 %145
    %147 = vrot.lane.b32.xlu0 %v116, 127
    %v148 = vpop.permute.xlu0 %147
    %vm149 = vcmp.ne.s32.totalorder %v118, 0
    %vm150 = vcmp.ne.s32.totalorder %v120, 0
    %vm151 = vcmp.ne.s32.totalorder %v122, 0
    %vm152 = vcmp.ne.s32.totalorder %v124, 0
    %vm153 = vcmp.ne.s32.totalorder %v126, 0
    %vm154 = vcmp.ne.s32.totalorder %v128, 0
    %vm155 = vcmp.ne.s32.totalorder %v130, 0
    %vm156 = vcmp.ne.s32.totalorder %v132, 0
    %vm157 = vcmp.ne.s32.totalorder %v134, 0
    %vm158 = vcmp.ne.s32.totalorder %v136, 0
    %vm159 = vcmp.ne.s32.totalorder %v138, 0
    %vm160 = vcmp.ne.s32.totalorder %v140, 0
    %vm161 = vcmp.ne.s32.totalorder %v142, 0
    %vm162 = vcmp.ne.s32.totalorder %v144, 0
    %vm163 = vcmp.ne.s32.totalorder %v146, 0
    %vm164 = vcmp.ne.s32.totalorder %v148, 0
    %vm165 = vmand %vm85, %vm149
    %vm166 = vmand %vm86, %vm150
    %vm167 = vmand %vm87, %vm151
    %vm168 = vmand %vm88, %vm152
    %vm169 = vmand %vm89, %vm153
    %vm170 = vmand %vm90, %vm154
    %vm171 = vmand %vm91, %vm155
    %vm172 = vmand %vm92, %vm156
    %vm173 = vmand %vm93, %vm157
    %vm174 = vmand %vm94, %vm158
    %vm175 = vmand %vm95, %vm159
    %vm176 = vmand %vm96, %vm160
    %vm177 = vmand %vm97, %vm161
    %vm178 = vmand %vm98, %vm162
    %vm179 = vmand %vm99, %vm163
    %vm180 = vmand %vm100, %vm164
    %v181 = vsel %vm69, 1, 0
    %v182 = vsel %vm70, 1, 0
    %v183 = vsel %vm71, 1, 0
    %v184 = vsel %vm72, 1, 0
    %v185 = vsel %vm73, 1, 0
    %v186 = vsel %vm74, 1, 0
    %v187 = vsel %vm75, 1, 0
    %v188 = vsel %vm76, 1, 0
    %v189 = vsel %vm77, 1, 0
    %v190 = vsel %vm78, 1, 0
    %v191 = vsel %vm79, 1, 0
    %v192 = vsel %vm80, 1, 0
    %v193 = vsel %vm81, 1, 0
    %v194 = vsel %vm82, 1, 0
    %v195 = vsel %vm83, 1, 0
    %v196 = vsel %vm84, 1, 0
    %197 = vrot.lane.b32.xlu0 %v181, 127
    %v198 = vpop.permute.xlu0 %197
    %199 = vrot.lane.b32.xlu0 %v182, 127
    %v200 = vpop.permute.xlu0 %199
    %201 = vrot.lane.b32.xlu0 %v183, 127
    %v202 = vpop.permute.xlu0 %201
    %203 = vrot.lane.b32.xlu0 %v184, 127
    %v204 = vpop.permute.xlu0 %203
    %205 = vrot.lane.b32.xlu0 %v185, 127
    %v206 = vpop.permute.xlu0 %205
    %207 = vrot.lane.b32.xlu0 %v186, 127
    %v208 = vpop.permute.xlu0 %207
    %209 = vrot.lane.b32.xlu0 %v187, 127
    %v210 = vpop.permute.xlu0 %209
    %211 = vrot.lane.b32.xlu0 %v188, 127
    %v212 = vpop.permute.xlu0 %211
    %213 = vrot.lane.b32.xlu0 %v189, 127
    %v214 = vpop.permute.xlu0 %213
    %215 = vrot.lane.b32.xlu0 %v190, 127
    %v216 = vpop.permute.xlu0 %215
    %217 = vrot.lane.b32.xlu0 %v191, 127
    %v218 = vpop.permute.xlu0 %217
    %219 = vrot.lane.b32.xlu0 %v192, 127
    %v220 = vpop.permute.xlu0 %219
    %221 = vrot.lane.b32.xlu0 %v193, 127
    %v222 = vpop.permute.xlu0 %221
    %223 = vrot.lane.b32.xlu0 %v194, 127
    %v224 = vpop.permute.xlu0 %223
    %225 = vrot.lane.b32.xlu0 %v195, 127
    %v226 = vpop.permute.xlu0 %225
    %227 = vrot.lane.b32.xlu0 %v196, 127
    %v228 = vpop.permute.xlu0 %227
    %vm229 = vcmp.ne.s32.totalorder %v198, 0
    %vm230 = vcmp.ne.s32.totalorder %v200, 0
    %vm231 = vcmp.ne.s32.totalorder %v202, 0
    %vm232 = vcmp.ne.s32.totalorder %v204, 0
    %vm233 = vcmp.ne.s32.totalorder %v206, 0
    %vm234 = vcmp.ne.s32.totalorder %v208, 0
    %vm235 = vcmp.ne.s32.totalorder %v210, 0
    %vm236 = vcmp.ne.s32.totalorder %v212, 0
    %vm237 = vcmp.ne.s32.totalorder %v214, 0
    %vm238 = vcmp.ne.s32.totalorder %v216, 0
    %vm239 = vcmp.ne.s32.totalorder %v218, 0
    %vm240 = vcmp.ne.s32.totalorder %v220, 0
    %vm241 = vcmp.ne.s32.totalorder %v222, 0
    %vm242 = vcmp.ne.s32.totalorder %v224, 0
    %vm243 = vcmp.ne.s32.totalorder %v226, 0
    %vm244 = vcmp.ne.s32.totalorder %v228, 0
    %vm245 = vmand %vm165, %vm229
    %vm246 = vmand %vm166, %vm230
    %vm247 = vmand %vm167, %vm231
    %vm248 = vmand %vm168, %vm232
    %vm249 = vmand %vm169, %vm233
    %vm250 = vmand %vm170, %vm234
    %vm251 = vmand %vm171, %vm235
    %vm252 = vmand %vm172, %vm236
    %vm253 = vmand %vm173, %vm237
    %vm254 = vmand %vm174, %vm238
    %vm255 = vmand %vm175, %vm239
    %vm256 = vmand %vm176, %vm240
    %vm257 = vmand %vm177, %vm241
    %vm258 = vmand %vm178, %vm242
    %vm259 = vmand %vm179, %vm243
    %vm260 = vmand %vm180, %vm244
    %vm261 = vcmp.gt.f32.partialorder %v37, -2.0
    %vm262 = vcmp.gt.f32.partialorder %v38, -2.0
    %vm263 = vcmp.gt.f32.partialorder %v39, -2.0
    %vm264 = vcmp.gt.f32.partialorder %v40, -2.0
    %vm265 = vcmp.gt.f32.partialorder %v41, -2.0
    %vm266 = vcmp.gt.f32.partialorder %v42, -2.0
    %vm267 = vcmp.gt.f32.partialorder %v43, -2.0
    %vm268 = vcmp.gt.f32.partialorder %v44, -2.0
    %vm269 = vcmp.gt.f32.partialorder %v45, -2.0
    %vm270 = vcmp.gt.f32.partialorder %v46, -2.0
    %vm271 = vcmp.gt.f32.partialorder %v47, -2.0
    %vm272 = vcmp.gt.f32.partialorder %v48, -2.0
    %vm273 = vcmp.gt.f32.partialorder %v49, -2.0
    %vm274 = vcmp.gt.f32.partialorder %v50, -2.0
    %vm275 = vcmp.gt.f32.partialorder %v51, -2.0
    %vm276 = vcmp.gt.f32.partialorder %v52, -2.0
    %v277 = vsel %vm261, 1, 0
    %v278 = vsel %vm262, 1, 0
    %v279 = vsel %vm263, 1, 0
    %v280 = vsel %vm264, 1, 0
    %v281 = vsel %vm265, 1, 0
    %v282 = vsel %vm266, 1, 0
    %v283 = vsel %vm267, 1, 0
    %v284 = vsel %vm268, 1, 0
    %v285 = vsel %vm269, 1, 0
    %v286 = vsel %vm270, 1, 0
    %v287 = vsel %vm271, 1, 0
    %v288 = vsel %vm272, 1, 0
    %v289 = vsel %vm273, 1, 0
    %v290 = vsel %vm274, 1, 0
    %v291 = vsel %vm275, 1, 0
    %v292 = vsel %vm276, 1, 0
    %293 = vrot.lane.b32.xlu0 %v277, 126
    %v294 = vpop.permute.xlu0 %293
    %295 = vrot.lane.b32.xlu0 %v278, 126
    %v296 = vpop.permute.xlu0 %295
    %297 = vrot.lane.b32.xlu0 %v279, 126
    %v298 = vpop.permute.xlu0 %297
    %299 = vrot.lane.b32.xlu0 %v280, 126
    %v300 = vpop.permute.xlu0 %299
    %301 = vrot.lane.b32.xlu0 %v281, 126
    %v302 = vpop.permute.xlu0 %301
    %303 = vrot.lane.b32.xlu0 %v282, 126
    %v304 = vpop.permute.xlu0 %303
    %305 = vrot.lane.b32.xlu0 %v283, 126
    %v306 = vpop.permute.xlu0 %305
    %307 = vrot.lane.b32.xlu0 %v284, 126
    %v308 = vpop.permute.xlu0 %307
    %309 = vrot.lane.b32.xlu0 %v285, 126
    %v310 = vpop.permute.xlu0 %309
    %311 = vrot.lane.b32.xlu0 %v286, 126
    %v312 = vpop.permute.xlu0 %311
    %313 = vrot.lane.b32.xlu0 %v287, 126
    %v314 = vpop.permute.xlu0 %313
    %315 = vrot.lane.b32.xlu0 %v288, 126
    %v316 = vpop.permute.xlu0 %315
    %317 = vrot.lane.b32.xlu0 %v289, 126
    %v318 = vpop.permute.xlu0 %317
    %319 = vrot.lane.b32.xlu0 %v290, 126
    %v320 = vpop.permute.xlu0 %319
    %321 = vrot.lane.b32.xlu0 %v291, 126
    %v322 = vpop.permute.xlu0 %321
    %323 = vrot.lane.b32.xlu0 %v292, 126
    %v324 = vpop.permute.xlu0 %323
    %vm325 = vcmp.ne.s32.totalorder %v294, 0
    %vm326 = vcmp.ne.s32.totalorder %v296, 0
    %vm327 = vcmp.ne.s32.totalorder %v298, 0
    %vm328 = vcmp.ne.s32.totalorder %v300, 0
    %vm329 = vcmp.ne.s32.totalorder %v302, 0
    %vm330 = vcmp.ne.s32.totalorder %v304, 0
    %vm331 = vcmp.ne.s32.totalorder %v306, 0
    %vm332 = vcmp.ne.s32.totalorder %v308, 0
    %vm333 = vcmp.ne.s32.totalorder %v310, 0
    %vm334 = vcmp.ne.s32.totalorder %v312, 0
    %vm335 = vcmp.ne.s32.totalorder %v314, 0
    %vm336 = vcmp.ne.s32.totalorder %v316, 0
    %vm337 = vcmp.ne.s32.totalorder %v318, 0
    %vm338 = vcmp.ne.s32.totalorder %v320, 0
    %vm339 = vcmp.ne.s32.totalorder %v322, 0
    %vm340 = vcmp.ne.s32.totalorder %v324, 0
    %vm341 = vmand %vm245, %vm325
    %vm342 = vmand %vm246, %vm326
    %vm343 = vmand %vm247, %vm327
    %vm344 = vmand %vm248, %vm328
    %vm345 = vmand %vm249, %vm329
    %vm346 = vmand %vm250, %vm330
    %vm347 = vmand %vm251, %vm331
    %vm348 = vmand %vm252, %vm332
    %vm349 = vmand %vm253, %vm333
    %vm350 = vmand %vm254, %vm334
    %vm351 = vmand %vm255, %vm335
    %vm352 = vmand %vm256, %vm336
    %vm353 = vmand %vm257, %vm337
    %vm354 = vmand %vm258, %vm338
    %vm355 = vmand %vm259, %vm339
    %vm356 = vmand %vm260, %vm340
    %vm357 = vcmp.lt.f32.partialorder %v37, 2.0
    %vm358 = vcmp.lt.f32.partialorder %v38, 2.0
    %vm359 = vcmp.lt.f32.partialorder %v39, 2.0
    %vm360 = vcmp.lt.f32.partialorder %v40, 2.0
    %vm361 = vcmp.lt.f32.partialorder %v41, 2.0
    %vm362 = vcmp.lt.f32.partialorder %v42, 2.0
    %vm363 = vcmp.lt.f32.partialorder %v43, 2.0
    %vm364 = vcmp.lt.f32.partialorder %v44, 2.0
    %vm365 = vcmp.lt.f32.partialorder %v45, 2.0
    %vm366 = vcmp.lt.f32.partialorder %v46, 2.0
    %vm367 = vcmp.lt.f32.partialorder %v47, 2.0
    %vm368 = vcmp.lt.f32.partialorder %v48, 2.0
    %vm369 = vcmp.lt.f32.partialorder %v49, 2.0
    %vm370 = vcmp.lt.f32.partialorder %v50, 2.0
    %vm371 = vcmp.lt.f32.partialorder %v51, 2.0
    %vm372 = vcmp.lt.f32.partialorder %v52, 2.0
    %v373 = vsel %vm357, 1, 0
    %v374 = vsel %vm358, 1, 0
    %v375 = vsel %vm359, 1, 0
    %v376 = vsel %vm360, 1, 0
    %v377 = vsel %vm361, 1, 0
    %v378 = vsel %vm362, 1, 0
    %v379 = vsel %vm363, 1, 0
    %v380 = vsel %vm364, 1, 0
    %v381 = vsel %vm365, 1, 0
    %v382 = vsel %vm366, 1, 0
    %v383 = vsel %vm367, 1, 0
    %v384 = vsel %vm368, 1, 0
    %v385 = vsel %vm369, 1, 0
    %v386 = vsel %vm370, 1, 0
    %v387 = vsel %vm371, 1, 0
    %v388 = vsel %vm372, 1, 0
    %389 = vrot.lane.b32.xlu0 %v373, 126
    %v390 = vpop.permute.xlu0 %389
    %391 = vrot.lane.b32.xlu0 %v374, 126
    %v392 = vpop.permute.xlu0 %391
    %393 = vrot.lane.b32.xlu0 %v375, 126
    %v394 = vpop.permute.xlu0 %393
    %395 = vrot.lane.b32.xlu0 %v376, 126
    %v396 = vpop.permute.xlu0 %395
    %397 = vrot.lane.b32.xlu0 %v377, 126
    %v398 = vpop.permute.xlu0 %397
    %399 = vrot.lane.b32.xlu0 %v378, 126
    %v400 = vpop.permute.xlu0 %399
    %401 = vrot.lane.b32.xlu0 %v379, 126
    %v402 = vpop.permute.xlu0 %401
    %403 = vrot.lane.b32.xlu0 %v380, 126
    %v404 = vpop.permute.xlu0 %403
    %405 = vrot.lane.b32.xlu0 %v381, 126
    %v406 = vpop.permute.xlu0 %405
    %407 = vrot.lane.b32.xlu0 %v382, 126
    %v408 = vpop.permute.xlu0 %407
    %409 = vrot.lane.b32.xlu0 %v383, 126
    %v410 = vpop.permute.xlu0 %409
    %411 = vrot.lane.b32.xlu0 %v384, 126
    %v412 = vpop.permute.xlu0 %411
    %413 = vrot.lane.b32.xlu0 %v385, 126
    %v414 = vpop.permute.xlu0 %413
    %415 = vrot.lane.b32.xlu0 %v386, 126
    %v416 = vpop.permute.xlu0 %415
    %417 = vrot.lane.b32.xlu0 %v387, 126
    %v418 = vpop.permute.xlu0 %417
    %419 = vrot.lane.b32.xlu0 %v388, 126
    %v420 = vpop.permute.xlu0 %419
    %vm421 = vcmp.ne.s32.totalorder %v390, 0
    %vm422 = vcmp.ne.s32.totalorder %v392, 0
    %vm423 = vcmp.ne.s32.totalorder %v394, 0
    %vm424 = vcmp.ne.s32.totalorder %v396, 0
    %vm425 = vcmp.ne.s32.totalorder %v398, 0
    %vm426 = vcmp.ne.s32.totalorder %v400, 0
    %vm427 = vcmp.ne.s32.totalorder %v402, 0
    %vm428 = vcmp.ne.s32.totalorder %v404, 0
    %vm429 = vcmp.ne.s32.totalorder %v406, 0
    %vm430 = vcmp.ne.s32.totalorder %v408, 0
    %vm431 = vcmp.ne.s32.totalorder %v410, 0
    %vm432 = vcmp.ne.s32.totalorder %v412, 0
    %vm433 = vcmp.ne.s32.totalorder %v414, 0
    %vm434 = vcmp.ne.s32.totalorder %v416, 0
    %vm435 = vcmp.ne.s32.totalorder %v418, 0
    %vm436 = vcmp.ne.s32.totalorder %v420, 0
    %vm437 = vmand %vm341, %vm421
    %vm438 = vmand %vm342, %vm422
    %vm439 = vmand %vm343, %vm423
    %vm440 = vmand %vm344, %vm424
    %vm441 = vmand %vm345, %vm425
    %vm442 = vmand %vm346, %vm426
    %vm443 = vmand %vm347, %vm427
    %vm444 = vmand %vm348, %vm428
    %vm445 = vmand %vm349, %vm429
    %vm446 = vmand %vm350, %vm430
    %vm447 = vmand %vm351, %vm431
    %vm448 = vmand %vm352, %vm432
    %vm449 = vmand %vm353, %vm433
    %vm450 = vmand %vm354, %vm434
    %vm451 = vmand %vm355, %vm435
    %vm452 = vmand %vm356, %vm436
    %v453 = vsel %vm437, 1, 0
    %v454 = vsel %vm438, 1, 0
    %v455 = vsel %vm439, 1, 0
    %v456 = vsel %vm440, 1, 0
    %v457 = vsel %vm441, 1, 0
    %v458 = vsel %vm442, 1, 0
    %v459 = vsel %vm443, 1, 0
    %v460 = vsel %vm444, 1, 0
    %v461 = vsel %vm445, 1, 0
    %v462 = vsel %vm446, 1, 0
    %v463 = vsel %vm447, 1, 0
    %v464 = vsel %vm448, 1, 0
    %v465 = vsel %vm449, 1, 0
    %v466 = vsel %vm450, 1, 0
    %v467 = vsel %vm451, 1, 0
    %v468 = vsel %vm452, 1, 0
    %v469 = vcvt.s32.f32 %v453
    %v470 = vcvt.s32.f32 %v454
    %v471 = vcvt.s32.f32 %v455
    %v472 = vcvt.s32.f32 %v456
    %v473 = vcvt.s32.f32 %v457
    %v474 = vcvt.s32.f32 %v458
    %v475 = vcvt.s32.f32 %v459
    %v476 = vcvt.s32.f32 %v460
    %v477 = vcvt.s32.f32 %v461
    %v478 = vcvt.s32.f32 %v462
    %v479 = vcvt.s32.f32 %v463
    %v480 = vcvt.s32.f32 %v464
    %v481 = vcvt.s32.f32 %v465
    %v482 = vcvt.s32.f32 %v466
    %v483 = vcvt.s32.f32 %v467
    %v484 = vcvt.s32.f32 %v468
    %486 = vset.pattern.permute.xlu0 0
    %487 = vperm.xlu0 %486, %v469
    %v488 = vpop.permute.xlu0 %487
    %491 = vset.pattern.permute.xlu0 0
    %492 = vperm.xlu0 %491, %v470
    %v493 = vpop.permute.xlu0 %492
    %496 = vset.pattern.permute.xlu0 0
    %497 = vperm.xlu0 %496, %v471
    %v498 = vpop.permute.xlu0 %497
    %501 = vset.pattern.permute.xlu0 0
    %502 = vperm.xlu0 %501, %v472
    %v503 = vpop.permute.xlu0 %502
    %506 = vset.pattern.permute.xlu0 0
    %507 = vperm.xlu0 %506, %v473
    %v508 = vpop.permute.xlu0 %507
    %511 = vset.pattern.permute.xlu0 0
    %512 = vperm.xlu0 %511, %v474
    %v513 = vpop.permute.xlu0 %512
    %516 = vset.pattern.permute.xlu0 0
    %517 = vperm.xlu0 %516, %v475
    %v518 = vpop.permute.xlu0 %517
    %521 = vset.pattern.permute.xlu0 0
    %522 = vperm.xlu0 %521, %v476
    %v523 = vpop.permute.xlu0 %522
    %526 = vset.pattern.permute.xlu0 0
    %527 = vperm.xlu0 %526, %v477
    %v528 = vpop.permute.xlu0 %527
    %531 = vset.pattern.permute.xlu0 0
    %532 = vperm.xlu0 %531, %v478
    %v533 = vpop.permute.xlu0 %532
    %536 = vset.pattern.permute.xlu0 0
    %537 = vperm.xlu0 %536, %v479
    %v538 = vpop.permute.xlu0 %537
    %541 = vset.pattern.permute.xlu0 0
    %542 = vperm.xlu0 %541, %v480
    %v543 = vpop.permute.xlu0 %542
    %546 = vset.pattern.permute.xlu0 0
    %547 = vperm.xlu0 %546, %v481
    %v548 = vpop.permute.xlu0 %547
    %551 = vset.pattern.permute.xlu0 0
    %552 = vperm.xlu0 %551, %v482
    %v553 = vpop.permute.xlu0 %552
    %556 = vset.pattern.permute.xlu0 0
    %557 = vperm.xlu0 %556, %v483
    %v558 = vpop.permute.xlu0 %557
    %561 = vset.pattern.permute.xlu0 0
    %562 = vperm.xlu0 %561, %v484
    %v563 = vpop.permute.xlu0 %562
    %v565 = vmul.f32 %v37, %v488
    %v566 = vmul.f32 %v38, %v493
    %v567 = vmul.f32 %v39, %v498
    %v568 = vmul.f32 %v40, %v503
    %v569 = vmul.f32 %v41, %v508
    %v570 = vmul.f32 %v42, %v513
    %v571 = vmul.f32 %v43, %v518
    %v572 = vmul.f32 %v44, %v523
    %v573 = vmul.f32 %v45, %v528
    %v574 = vmul.f32 %v46, %v533
    %v575 = vmul.f32 %v47, %v538
    %v576 = vmul.f32 %v48, %v543
    %v577 = vmul.f32 %v49, %v548
    %v578 = vmul.f32 %v50, %v553
    %v579 = vmul.f32 %v51, %v558
    %v580 = vmul.f32 %v52, %v563
    %vm581 = vcmask 23552
    %582 = vst.msk [vmem:[%s5] sm:$0xff] %vm581, %v565
    %583 = vst.msk [vmem:[%s5 + $0x8] sm:$0xff] %vm581, %v566
    %584 = vst.msk [vmem:[%s5 + $0x10] sm:$0xff] %vm581, %v567
    %585 = vst.msk [vmem:[%s5 + $0x18] sm:$0xff] %vm581, %v568
    %586 = vst.msk [vmem:[%s5 + $0x20] sm:$0xff] %vm581, %v569
    %587 = vst.msk [vmem:[%s5 + $0x28] sm:$0xff] %vm581, %v570
    %588 = vst.msk [vmem:[%s5 + $0x30] sm:$0xff] %vm581, %v571
    %589 = vst.msk [vmem:[%s5 + $0x38] sm:$0xff] %vm581, %v572
    %590 = vst.msk [vmem:[%s5 + $0x40] sm:$0xff] %vm581, %v573
    %591 = vst.msk [vmem:[%s5 + $0x48] sm:$0xff] %vm581, %v574
    %592 = vst.msk [vmem:[%s5 + $0x50] sm:$0xff] %vm581, %v575
    %593 = vst.msk [vmem:[%s5 + $0x58] sm:$0xff] %vm581, %v576
    %594 = vst.msk [vmem:[%s5 + $0x60] sm:$0xff] %vm581, %v577
    %595 = vst.msk [vmem:[%s5 + $0x68] sm:$0xff] %vm581, %v578
    %596 = vst.msk [vmem:[%s5 + $0x70] sm:$0xff] %vm581, %v579
    %597 = vst.msk [vmem:[%s5 + $0x78] sm:$0xff] %vm581, %v580
    %v598 = vld [vmem:[%s1] sm:$0xff]
    %v599 = vld [vmem:[%s1 + $0x8] sm:$0xff]
    %v600 = vld [vmem:[%s1 + $0x10] sm:$0xff]
    %v601 = vld [vmem:[%s1 + $0x18] sm:$0xff]
    %v602 = vld [vmem:[%s1 + $0x20] sm:$0xff]
    %v603 = vld [vmem:[%s1 + $0x28] sm:$0xff]
    %v604 = vld [vmem:[%s1 + $0x30] sm:$0xff]
    %v605 = vld [vmem:[%s1 + $0x38] sm:$0xff]
    %v606 = vld [vmem:[%s1 + $0x40] sm:$0xff]
    %v607 = vld [vmem:[%s1 + $0x48] sm:$0xff]
    %v608 = vld [vmem:[%s1 + $0x50] sm:$0xff]
    %v609 = vld [vmem:[%s1 + $0x58] sm:$0xff]
    %v610 = vld [vmem:[%s1 + $0x60] sm:$0xff]
    %v611 = vld [vmem:[%s1 + $0x68] sm:$0xff]
    %v612 = vld [vmem:[%s1 + $0x70] sm:$0xff]
    %v613 = vld [vmem:[%s1 + $0x78] sm:$0xff]
    %v614 = vmul.f32 %v598, %v488
    %v615 = vmul.f32 %v599, %v493
    %v616 = vmul.f32 %v600, %v498
    %v617 = vmul.f32 %v601, %v503
    %v618 = vmul.f32 %v602, %v508
    %v619 = vmul.f32 %v603, %v513
    %v620 = vmul.f32 %v604, %v518
    %v621 = vmul.f32 %v605, %v523
    %v622 = vmul.f32 %v606, %v528
    %v623 = vmul.f32 %v607, %v533
    %v624 = vmul.f32 %v608, %v538
    %v625 = vmul.f32 %v609, %v543
    %v626 = vmul.f32 %v610, %v548
    %v627 = vmul.f32 %v611, %v553
    %v628 = vmul.f32 %v612, %v558
    %v629 = vmul.f32 %v613, %v563
    %v630 = vpack.c.bf16 %v615, %v614
    %v631 = vpack.c.bf16 %v617, %v616
    %v632 = vpack.c.bf16 %v619, %v618
    %v633 = vpack.c.bf16 %v621, %v620
    %v634 = vpack.c.bf16 %v623, %v622
    %v635 = vpack.c.bf16 %v625, %v624
    %v636 = vpack.c.bf16 %v627, %v626
    %v637 = vpack.c.bf16 %v629, %v628
    %v638 = vld [vmem:[%s2] sm:$0x77]
    %v639 = vld [vmem:[%s2 + $0x8] sm:$0x77]
    %v640 = vld [vmem:[%s2 + $0x10] sm:$0x77]
    %v641 = vld [vmem:[#allocation2] sm:$0xff]
    %v642 = vld [vmem:[#allocation2 + $0x8] sm:$0xff]
    %v643 = vld [vmem:[#allocation2 + $0x10] sm:$0xff]
    %v644 = vld [vmem:[#allocation2 + $0x18] sm:$0xff]
    %v645 = vld [vmem:[#allocation2 + $0x20] sm:$0xff]
    %v646 = vld [vmem:[#allocation2 + $0x28] sm:$0xff]
    %v647 = vld [vmem:[#allocation2 + $0x30] sm:$0xff]
    %v648 = vld [vmem:[#allocation2 + $0x38] sm:$0xff]
    %v649 = vld [vmem:[#allocation2 + $0x40] sm:$0xff]
    %v650 = vld [vmem:[#allocation2 + $0x48] sm:$0xff]
    %v651 = vld [vmem:[#allocation2 + $0x50] sm:$0xff]
    %v652 = vld [vmem:[#allocation2 + $0x58] sm:$0xff]
    %v653 = vld [vmem:[#allocation2 + $0x60] sm:$0xff]
    %v654 = vld [vmem:[#allocation2 + $0x68] sm:$0xff]
    %v655 = vld [vmem:[#allocation2 + $0x70] sm:$0xff]
    %v656 = vld [vmem:[#allocation2 + $0x78] sm:$0xff]
    %v657 = vld [vmem:[#allocation2 + $0x80] sm:$0xff]
    %v658 = vld [vmem:[#allocation2 + $0x88] sm:$0xff]
    %v659 = vld [vmem:[#allocation2 + $0x90] sm:$0xff]
    %v660 = vld [vmem:[#allocation2 + $0x98] sm:$0xff]
    %v661 = vld [vmem:[#allocation2 + $0xa0] sm:$0xff]
    %v662 = vld [vmem:[#allocation2 + $0xa8] sm:$0xff]
    %v663 = vld [vmem:[#allocation2 + $0xb0] sm:$0xff]
    %v664 = vld [vmem:[#allocation2 + $0xb8] sm:$0xff]
    %v665 = vld [vmem:[#allocation2 + $0xc0] sm:$0xff]
    %v666 = vld [vmem:[#allocation2 + $0xc8] sm:$0xff]
    %v667 = vld [vmem:[#allocation2 + $0xd0] sm:$0xff]
    %v668 = vld [vmem:[#allocation2 + $0xd8] sm:$0xff]
    %v669 = vld [vmem:[#allocation2 + $0xe0] sm:$0xff]
    %v670 = vld [vmem:[#allocation2 + $0xe8] sm:$0xff]
    %v671 = vld [vmem:[#allocation2 + $0xf0] sm:$0xff]
    %v672 = vld [vmem:[#allocation2 + $0xf8] sm:$0xff]
    %v673 = vld [vmem:[#allocation2 + $0x100] sm:$0xff]
    %v674 = vld [vmem:[#allocation2 + $0x108] sm:$0xff]
    %v675 = vld [vmem:[#allocation2 + $0x110] sm:$0xff]
    %v676 = vld [vmem:[#allocation2 + $0x118] sm:$0xff]
    %v677 = vld [vmem:[#allocation2 + $0x120] sm:$0xff]
    %v678 = vld [vmem:[#allocation2 + $0x128] sm:$0xff]
    %v679 = vld [vmem:[#allocation2 + $0x130] sm:$0xff]
    %v680 = vld [vmem:[#allocation2 + $0x138] sm:$0xff]
    %v681 = vld [vmem:[#allocation2 + $0x140] sm:$0xff]
    %v682 = vld [vmem:[#allocation2 + $0x148] sm:$0xff]
    %v683 = vld [vmem:[#allocation2 + $0x150] sm:$0xff]
    %v684 = vld [vmem:[#allocation2 + $0x158] sm:$0xff]
    %v685 = vld [vmem:[#allocation2 + $0x160] sm:$0xff]
    %v686 = vld [vmem:[#allocation2 + $0x168] sm:$0xff]
    %v687 = vld [vmem:[#allocation2 + $0x170] sm:$0xff]
    %v688 = vld [vmem:[#allocation2 + $0x178] sm:$0xff]
    %v689 = vld [vmem:[#allocation2 + $0x180] sm:$0xff]
    %v690 = vld [vmem:[#allocation2 + $0x188] sm:$0xff]
    %v691 = vld [vmem:[#allocation2 + $0x190] sm:$0xff]
    %v692 = vld [vmem:[#allocation2 + $0x198] sm:$0xff]
    %v693 = vld [vmem:[#allocation2 + $0x1a0] sm:$0xff]
    %v694 = vld [vmem:[#allocation2 + $0x1a8] sm:$0xff]
    %v695 = vld [vmem:[#allocation2 + $0x1b0] sm:$0xff]
    %v696 = vld [vmem:[#allocation2 + $0x1b8] sm:$0xff]
    %v697 = vld [vmem:[#allocation2 + $0x1c0] sm:$0xff]
    %v698 = vld [vmem:[#allocation2 + $0x1c8] sm:$0xff]
    %v699 = vld [vmem:[#allocation2 + $0x1d0] sm:$0xff]
    %v700 = vld [vmem:[#allocation2 + $0x1d8] sm:$0xff]
    %v701 = vld [vmem:[#allocation2 + $0x1e0] sm:$0xff]
    %v702 = vld [vmem:[#allocation2 + $0x1e8] sm:$0xff]
    %v703 = vld [vmem:[#allocation2 + $0x1f0] sm:$0xff]
    %v704 = vld [vmem:[#allocation2 + $0x1f8] sm:$0xff]
    %v705 = vld [vmem:[#allocation2 + $0x200] sm:$0xff]
    %v706 = vld [vmem:[#allocation2 + $0x208] sm:$0xff]
    %v707 = vld [vmem:[#allocation2 + $0x210] sm:$0xff]
    %v708 = vld [vmem:[#allocation2 + $0x218] sm:$0xff]
    %v709 = vld [vmem:[#allocation2 + $0x220] sm:$0xff]
    %v710 = vld [vmem:[#allocation2 + $0x228] sm:$0xff]
    %v711 = vld [vmem:[#allocation2 + $0x230] sm:$0xff]
    %v712 = vld [vmem:[#allocation2 + $0x238] sm:$0xff]
    %v713 = vld [vmem:[#allocation2 + $0x240] sm:$0xff]
    %v714 = vld [vmem:[#allocation2 + $0x248] sm:$0xff]
    %v715 = vld [vmem:[#allocation2 + $0x250] sm:$0xff]
    %v716 = vld [vmem:[#allocation2 + $0x258] sm:$0xff]
    %v717 = vld [vmem:[#allocation2 + $0x260] sm:$0xff]
    %v718 = vld [vmem:[#allocation2 + $0x268] sm:$0xff]
    %v719 = vld [vmem:[#allocation2 + $0x270] sm:$0xff]
    %v720 = vld [vmem:[#allocation2 + $0x278] sm:$0xff]
    %v721 = vld [vmem:[#allocation2 + $0x280] sm:$0xff]
    %v722 = vld [vmem:[#allocation2 + $0x288] sm:$0xff]
    %v723 = vld [vmem:[#allocation2 + $0x290] sm:$0xff]
    %v724 = vld [vmem:[#allocation2 + $0x298] sm:$0xff]
    %v725 = vld [vmem:[#allocation2 + $0x2a0] sm:$0xff]
    %v726 = vld [vmem:[#allocation2 + $0x2a8] sm:$0xff]
    %v727 = vld [vmem:[#allocation2 + $0x2b0] sm:$0xff]
    %v728 = vld [vmem:[#allocation2 + $0x2b8] sm:$0xff]
    %v729 = vld [vmem:[#allocation2 + $0x2c0] sm:$0xff]
    %v730 = vld [vmem:[#allocation2 + $0x2c8] sm:$0xff]
    %v731 = vld [vmem:[#allocation2 + $0x2d0] sm:$0xff]
    %v732 = vld [vmem:[#allocation2 + $0x2d8] sm:$0xff]
    %v733 = vld [vmem:[#allocation2 + $0x2e0] sm:$0xff]
    %v734 = vld [vmem:[#allocation2 + $0x2e8] sm:$0xff]
    %v735 = vld [vmem:[#allocation2 + $0x2f0] sm:$0xff]
    %v736 = vld [vmem:[#allocation2 + $0x2f8] sm:$0xff]
    %v740 = vunpack.c.l.b16 %v638
    %v741 = vunpack.c.h.b16 %v638
    %v742 = vunpack.c.l.b16 %v639
    %v743 = vunpack.c.h.b16 %v639
    %v744 = vunpack.c.l.b16 %v640
    %v745 = vunpack.c.h.b16 %v640
    %v746 = vpack.c.b16 %v740, %v740
    %v747 = vpack.c.b16 %v741, %v741
    %v748 = vpack.c.b16 %v742, %v742
    %v749 = vpack.c.b16 %v743, %v743
    %v750 = vpack.c.b16 %v744, %v744
    %v751 = vpack.c.b16 %v745, %v745
    %vm752 = vcmask 39936
    %v754 = vsel %vm752, %v630, 0
    %v757 = vsel %vm752, %v631, 0
    %v760 = vsel %vm752, %v632, 0
    %v763 = vsel %vm752, %v633, 0
    %v766 = vsel %vm752, %v634, 0
    %v769 = vsel %vm752, %v635, 0
    %v772 = vsel %vm752, %v636, 0
    %v775 = vsel %vm752, %v637, 0
    %vm777 = vcmask 1041408
    %vm778 = vcmask 1042432
    %v779 = vsel %vm777, 4294967295, 65535
    %v780 = vsel %vm778, %v779, 0
    %v782 = vand.u32 %v746, %v780
    %v785 = vand.u32 %v747, %v780
    %v788 = vand.u32 %v748, %v780
    %v791 = vand.u32 %v749, %v780
    %v794 = vand.u32 %v750, %v780
    %v797 = vand.u32 %v751, %v780
    %799 = vmatpush.bf16.msra.mxu0 0
    %800 = vmatpush.bf16.msra.mxu0 0
    %801 = vmatpush.bf16.msra.mxu0 0
    %802 = vmatpush.bf16.msra.mxu0 0
    %803 = vmatpush.bf16.msra.mxu0 0
    %804 = vmatpush.bf16.msra.mxu0 0
    %805 = vmatpush.bf16.msra.mxu0 0
    %806 = vmatpush.bf16.msra.mxu0 %v782
    %807 = vmatmul.bf16.gmra.mxu0 %v754
    %v808 = vpop.f32.mrf.mxu0
    %v809 = vadd.f32 %v641, %v808
    %v810 = vpop.f32.mrf.mxu0
    %v811 = vadd.f32 %v647, %v810
    %812 = vmatmul.bf16.gmra.mxu0 %v757
    %v813 = vpop.f32.mrf.mxu0
    %v814 = vadd.f32 %v653, %v813
    %v815 = vpop.f32.mrf.mxu0
    %v816 = vadd.f32 %v659, %v815
    %817 = vmatmul.bf16.gmra.mxu0 %v760
    %v818 = vpop.f32.mrf.mxu0
    %v819 = vadd.f32 %v665, %v818
    %v820 = vpop.f32.mrf.mxu0
    %v821 = vadd.f32 %v671, %v820
    %822 = vmatmul.bf16.gmra.mxu0 %v763
    %v823 = vpop.f32.mrf.mxu0
    %v824 = vadd.f32 %v677, %v823
    %v825 = vpop.f32.mrf.mxu0
    %v826 = vadd.f32 %v683, %v825
    %827 = vmatmul.bf16.gmra.mxu0 %v766
    %v828 = vpop.f32.mrf.mxu0
    %v829 = vadd.f32 %v689, %v828
    %v830 = vpop.f32.mrf.mxu0
    %v831 = vadd.f32 %v695, %v830
    %832 = vmatmul.bf16.gmra.mxu0 %v769
    %v833 = vpop.f32.mrf.mxu0
    %v834 = vadd.f32 %v701, %v833
    %v835 = vpop.f32.mrf.mxu0
    %v836 = vadd.f32 %v707, %v835
    %837 = vmatmul.bf16.gmra.mxu0 %v772
    %v838 = vpop.f32.mrf.mxu0
    %v839 = vadd.f32 %v713, %v838
    %v840 = vpop.f32.mrf.mxu0
    %v841 = vadd.f32 %v719, %v840
    %842 = vmatmul.bf16.gmra.mxu0 %v775
    %v843 = vpop.f32.mrf.mxu0
    %v844 = vadd.f32 %v725, %v843
    %v845 = vpop.f32.mrf.mxu0
    %v846 = vadd.f32 %v731, %v845
    %847 = vdwg.mxu0
    %848 = vmatpush.bf16.msra.mxu0 0
    %849 = vmatpush.bf16.msra.mxu0 0
    %850 = vmatpush.bf16.msra.mxu0 0
    %851 = vmatpush.bf16.msra.mxu0 0
    %852 = vmatpush.bf16.msra.mxu0 0
    %853 = vmatpush.bf16.msra.mxu0 0
    %854 = vmatpush.bf16.msra.mxu0 0
    %855 = vmatpush.bf16.msra.mxu0 %v785
    %856 = vmatmul.bf16.gmra.mxu0 %v754
    %v857 = vpop.f32.mrf.mxu0
    %v858 = vadd.f32 %v642, %v857
    %v859 = vpop.f32.mrf.mxu0
    %v860 = vadd.f32 %v648, %v859
    %861 = vmatmul.bf16.gmra.mxu0 %v757
    %v862 = vpop.f32.mrf.mxu0
    %v863 = vadd.f32 %v654, %v862
    %v864 = vpop.f32.mrf.mxu0
    %v865 = vadd.f32 %v660, %v864
    %866 = vmatmul.bf16.gmra.mxu0 %v760
    %v867 = vpop.f32.mrf.mxu0
    %v868 = vadd.f32 %v666, %v867
    %v869 = vpop.f32.mrf.mxu0
    %v870 = vadd.f32 %v672, %v869
    %871 = vmatmul.bf16.gmra.mxu0 %v763
    %v872 = vpop.f32.mrf.mxu0
    %v873 = vadd.f32 %v678, %v872
    %v874 = vpop.f32.mrf.mxu0
    %v875 = vadd.f32 %v684, %v874
    %876 = vmatmul.bf16.gmra.mxu0 %v766
    %v877 = vpop.f32.mrf.mxu0
    %v878 = vadd.f32 %v690, %v877
    %v879 = vpop.f32.mrf.mxu0
    %v880 = vadd.f32 %v696, %v879
    %881 = vmatmul.bf16.gmra.mxu0 %v769
    %v882 = vpop.f32.mrf.mxu0
    %v883 = vadd.f32 %v702, %v882
    %v884 = vpop.f32.mrf.mxu0
    %v885 = vadd.f32 %v708, %v884
    %886 = vmatmul.bf16.gmra.mxu0 %v772
    %v887 = vpop.f32.mrf.mxu0
    %v888 = vadd.f32 %v714, %v887
    %v889 = vpop.f32.mrf.mxu0
    %v890 = vadd.f32 %v720, %v889
    %891 = vmatmul.bf16.gmra.mxu0 %v775
    %v892 = vpop.f32.mrf.mxu0
    %v893 = vadd.f32 %v726, %v892
    %v894 = vpop.f32.mrf.mxu0
    %v895 = vadd.f32 %v732, %v894
    %896 = vdwg.mxu0
    %897 = vmatpush.bf16.msra.mxu0 0
    %898 = vmatpush.bf16.msra.mxu0 0
    %899 = vmatpush.bf16.msra.mxu0 0
    %900 = vmatpush.bf16.msra.mxu0 0
    %901 = vmatpush.bf16.msra.mxu0 0
    %902 = vmatpush.bf16.msra.mxu0 0
    %903 = vmatpush.bf16.msra.mxu0 0
    %904 = vmatpush.bf16.msra.mxu0 %v788
    %905 = vmatmul.bf16.gmra.mxu0 %v754
    %v906 = vpop.f32.mrf.mxu0
    %v907 = vadd.f32 %v643, %v906
    %v908 = vpop.f32.mrf.mxu0
    %v909 = vadd.f32 %v649, %v908
    %910 = vmatmul.bf16.gmra.mxu0 %v757
    %v911 = vpop.f32.mrf.mxu0
    %v912 = vadd.f32 %v655, %v911
    %v913 = vpop.f32.mrf.mxu0
    %v914 = vadd.f32 %v661, %v913
    %915 = vmatmul.bf16.gmra.mxu0 %v760
    %v916 = vpop.f32.mrf.mxu0
    %v917 = vadd.f32 %v667, %v916
    %v918 = vpop.f32.mrf.mxu0
    %v919 = vadd.f32 %v673, %v918
    %920 = vmatmul.bf16.gmra.mxu0 %v763
    %v921 = vpop.f32.mrf.mxu0
    %v922 = vadd.f32 %v679, %v921
    %v923 = vpop.f32.mrf.mxu0
    %v924 = vadd.f32 %v685, %v923
    %925 = vmatmul.bf16.gmra.mxu0 %v766
    %v926 = vpop.f32.mrf.mxu0
    %v927 = vadd.f32 %v691, %v926
    %v928 = vpop.f32.mrf.mxu0
    %v929 = vadd.f32 %v697, %v928
    %930 = vmatmul.bf16.gmra.mxu0 %v769
    %v931 = vpop.f32.mrf.mxu0
    %v932 = vadd.f32 %v703, %v931
    %v933 = vpop.f32.mrf.mxu0
    %v934 = vadd.f32 %v709, %v933
    %935 = vmatmul.bf16.gmra.mxu0 %v772
    %v936 = vpop.f32.mrf.mxu0
    %v937 = vadd.f32 %v715, %v936
    %v938 = vpop.f32.mrf.mxu0
    %v939 = vadd.f32 %v721, %v938
    %940 = vmatmul.bf16.gmra.mxu0 %v775
    %v941 = vpop.f32.mrf.mxu0
    %v942 = vadd.f32 %v727, %v941
    %v943 = vpop.f32.mrf.mxu0
    %v944 = vadd.f32 %v733, %v943
    %945 = vdwg.mxu0
    %946 = vmatpush.bf16.msra.mxu0 0
    %947 = vmatpush.bf16.msra.mxu0 0
    %948 = vmatpush.bf16.msra.mxu0 0
    %949 = vmatpush.bf16.msra.mxu0 0
    %950 = vmatpush.bf16.msra.mxu0 0
    %951 = vmatpush.bf16.msra.mxu0 0
    %952 = vmatpush.bf16.msra.mxu0 0
    %953 = vmatpush.bf16.msra.mxu0 %v791
    %954 = vmatmul.bf16.gmra.mxu0 %v754
    %v955 = vpop.f32.mrf.mxu0
    %v956 = vadd.f32 %v644, %v955
    %v957 = vpop.f32.mrf.mxu0
    %v958 = vadd.f32 %v650, %v957
    %959 = vmatmul.bf16.gmra.mxu0 %v757
    %v960 = vpop.f32.mrf.mxu0
    %v961 = vadd.f32 %v656, %v960
    %v962 = vpop.f32.mrf.mxu0
    %v963 = vadd.f32 %v662, %v962
    %964 = vmatmul.bf16.gmra.mxu0 %v760
    %v965 = vpop.f32.mrf.mxu0
    %v966 = vadd.f32 %v668, %v965
    %v967 = vpop.f32.mrf.mxu0
    %v968 = vadd.f32 %v674, %v967
    %969 = vmatmul.bf16.gmra.mxu0 %v763
    %v970 = vpop.f32.mrf.mxu0
    %v971 = vadd.f32 %v680, %v970
    %v972 = vpop.f32.mrf.mxu0
    %v973 = vadd.f32 %v686, %v972
    %974 = vmatmul.bf16.gmra.mxu0 %v766
    %v975 = vpop.f32.mrf.mxu0
    %v976 = vadd.f32 %v692, %v975
    %v977 = vpop.f32.mrf.mxu0
    %v978 = vadd.f32 %v698, %v977
    %979 = vmatmul.bf16.gmra.mxu0 %v769
    %v980 = vpop.f32.mrf.mxu0
    %v981 = vadd.f32 %v704, %v980
    %v982 = vpop.f32.mrf.mxu0
    %v983 = vadd.f32 %v710, %v982
    %984 = vmatmul.bf16.gmra.mxu0 %v772
    %v985 = vpop.f32.mrf.mxu0
    %v986 = vadd.f32 %v716, %v985
    %v987 = vpop.f32.mrf.mxu0
    %v988 = vadd.f32 %v722, %v987
    %989 = vmatmul.bf16.gmra.mxu0 %v775
    %v990 = vpop.f32.mrf.mxu0
    %v991 = vadd.f32 %v728, %v990
    %v992 = vpop.f32.mrf.mxu0
    %v993 = vadd.f32 %v734, %v992
    %994 = vdwg.mxu0
    %995 = vmatpush.bf16.msra.mxu0 0
    %996 = vmatpush.bf16.msra.mxu0 0
    %997 = vmatpush.bf16.msra.mxu0 0
    %998 = vmatpush.bf16.msra.mxu0 0
    %999 = vmatpush.bf16.msra.mxu0 0
    %1000 = vmatpush.bf16.msra.mxu0 0
    %1001 = vmatpush.bf16.msra.mxu0 0
    %1002 = vmatpush.bf16.msra.mxu0 %v794
    %1003 = vmatmul.bf16.gmra.mxu0 %v754
    %v1004 = vpop.f32.mrf.mxu0
    %v1005 = vadd.f32 %v645, %v1004
    %v1006 = vpop.f32.mrf.mxu0
    %v1007 = vadd.f32 %v651, %v1006
    %1008 = vmatmul.bf16.gmra.mxu0 %v757
    %v1009 = vpop.f32.mrf.mxu0
    %v1010 = vadd.f32 %v657, %v1009
    %v1011 = vpop.f32.mrf.mxu0
    %v1012 = vadd.f32 %v663, %v1011
    %1013 = vmatmul.bf16.gmra.mxu0 %v760
    %v1014 = vpop.f32.mrf.mxu0
    %v1015 = vadd.f32 %v669, %v1014
    %v1016 = vpop.f32.mrf.mxu0
    %v1017 = vadd.f32 %v675, %v1016
    %1018 = vmatmul.bf16.gmra.mxu0 %v763
    %v1019 = vpop.f32.mrf.mxu0
    %v1020 = vadd.f32 %v681, %v1019
    %v1021 = vpop.f32.mrf.mxu0
    %v1022 = vadd.f32 %v687, %v1021
    %1023 = vmatmul.bf16.gmra.mxu0 %v766
    %v1024 = vpop.f32.mrf.mxu0
    %v1025 = vadd.f32 %v693, %v1024
    %v1026 = vpop.f32.mrf.mxu0
    %v1027 = vadd.f32 %v699, %v1026
    %1028 = vmatmul.bf16.gmra.mxu0 %v769
    %v1029 = vpop.f32.mrf.mxu0
    %v1030 = vadd.f32 %v705, %v1029
    %v1031 = vpop.f32.mrf.mxu0
    %v1032 = vadd.f32 %v711, %v1031
    %1033 = vmatmul.bf16.gmra.mxu0 %v772
    %v1034 = vpop.f32.mrf.mxu0
    %v1035 = vadd.f32 %v717, %v1034
    %v1036 = vpop.f32.mrf.mxu0
    %v1037 = vadd.f32 %v723, %v1036
    %1038 = vmatmul.bf16.gmra.mxu0 %v775
    %v1039 = vpop.f32.mrf.mxu0
    %v1040 = vadd.f32 %v729, %v1039
    %v1041 = vpop.f32.mrf.mxu0
    %v1042 = vadd.f32 %v735, %v1041
    %1043 = vdwg.mxu0
    %1044 = vmatpush.bf16.msra.mxu0 0
    %1045 = vmatpush.bf16.msra.mxu0 0
    %1046 = vmatpush.bf16.msra.mxu0 0
    %1047 = vmatpush.bf16.msra.mxu0 0
    %1048 = vmatpush.bf16.msra.mxu0 0
    %1049 = vmatpush.bf16.msra.mxu0 0
    %1050 = vmatpush.bf16.msra.mxu0 0
    %1051 = vmatpush.bf16.msra.mxu0 %v797
    %1052 = vmatmul.bf16.gmra.mxu0 %v754
    %v1053 = vpop.f32.mrf.mxu0
    %v1054 = vadd.f32 %v646, %v1053
    %v1055 = vpop.f32.mrf.mxu0
    %v1056 = vadd.f32 %v652, %v1055
    %1057 = vmatmul.bf16.gmra.mxu0 %v757
    %v1058 = vpop.f32.mrf.mxu0
    %v1059 = vadd.f32 %v658, %v1058
    %v1060 = vpop.f32.mrf.mxu0
    %v1061 = vadd.f32 %v664, %v1060
    %1062 = vmatmul.bf16.gmra.mxu0 %v760
    %v1063 = vpop.f32.mrf.mxu0
    %v1064 = vadd.f32 %v670, %v1063
    %v1065 = vpop.f32.mrf.mxu0
    %v1066 = vadd.f32 %v676, %v1065
    %1067 = vmatmul.bf16.gmra.mxu0 %v763
    %v1068 = vpop.f32.mrf.mxu0
    %v1069 = vadd.f32 %v682, %v1068
    %v1070 = vpop.f32.mrf.mxu0
    %v1071 = vadd.f32 %v688, %v1070
    %1072 = vmatmul.bf16.gmra.mxu0 %v766
    %v1073 = vpop.f32.mrf.mxu0
    %v1074 = vadd.f32 %v694, %v1073
    %v1075 = vpop.f32.mrf.mxu0
    %v1076 = vadd.f32 %v700, %v1075
    %1077 = vmatmul.bf16.gmra.mxu0 %v769
    %v1078 = vpop.f32.mrf.mxu0
    %v1079 = vadd.f32 %v706, %v1078
    %v1080 = vpop.f32.mrf.mxu0
    %v1081 = vadd.f32 %v712, %v1080
    %1082 = vmatmul.bf16.gmra.mxu0 %v772
    %v1083 = vpop.f32.mrf.mxu0
    %v1084 = vadd.f32 %v718, %v1083
    %v1085 = vpop.f32.mrf.mxu0
    %v1086 = vadd.f32 %v724, %v1085
    %1087 = vmatmul.bf16.gmra.mxu0 %v775
    %v1088 = vpop.f32.mrf.mxu0
    %v1089 = vadd.f32 %v730, %v1088
    %v1090 = vpop.f32.mrf.mxu0
    %v1091 = vadd.f32 %v736, %v1090
    %1092 = vdwg.mxu0
    %1093 = vst [vmem:[#allocation5] sm:$0xff] %v809
    %1094 = vst [vmem:[#allocation5 + $0x8] sm:$0xff] %v858
    %1095 = vst [vmem:[#allocation5 + $0x10] sm:$0xff] %v907
    %1096 = vst [vmem:[#allocation5 + $0x18] sm:$0xff] %v956
    %1097 = vst [vmem:[#allocation5 + $0x20] sm:$0xff] %v1005
    %1098 = vst [vmem:[#allocation5 + $0x28] sm:$0xff] %v1054
    %1099 = vst [vmem:[#allocation5 + $0x30] sm:$0xff] %v811
    %1100 = vst [vmem:[#allocation5 + $0x38] sm:$0xff] %v860
    %1101 = vst [vmem:[#allocation5 + $0x40] sm:$0xff] %v909
    %1102 = vst [vmem:[#allocation5 + $0x48] sm:$0xff] %v958
    %1103 = vst [vmem:[#allocation5 + $0x50] sm:$0xff] %v1007
    %1104 = vst [vmem:[#allocation5 + $0x58] sm:$0xff] %v1056
    %1105 = vst [vmem:[#allocation5 + $0x60] sm:$0xff] %v814
    %1106 = vst [vmem:[#allocation5 + $0x68] sm:$0xff] %v863
    %1107 = vst [vmem:[#allocation5 + $0x70] sm:$0xff] %v912
    %1108 = vst [vmem:[#allocation5 + $0x78] sm:$0xff] %v961
    %1109 = vst [vmem:[#allocation5 + $0x80] sm:$0xff] %v1010
    %1110 = vst [vmem:[#allocation5 + $0x88] sm:$0xff] %v1059
    %1111 = vst [vmem:[#allocation5 + $0x90] sm:$0xff] %v816
    %1112 = vst [vmem:[#allocation5 + $0x98] sm:$0xff] %v865
    %1113 = vst [vmem:[#allocation5 + $0xa0] sm:$0xff] %v914
    %1114 = vst [vmem:[#allocation5 + $0xa8] sm:$0xff] %v963
    %1115 = vst [vmem:[#allocation5 + $0xb0] sm:$0xff] %v1012
    %1116 = vst [vmem:[#allocation5 + $0xb8] sm:$0xff] %v1061
    %1117 = vst [vmem:[#allocation5 + $0xc0] sm:$0xff] %v819
    %1118 = vst [vmem:[#allocation5 + $0xc8] sm:$0xff] %v868
    %1119 = vst [vmem:[#allocation5 + $0xd0] sm:$0xff] %v917
    %1120 = vst [vmem:[#allocation5 + $0xd8] sm:$0xff] %v966
    %1121 = vst [vmem:[#allocation5 + $0xe0] sm:$0xff] %v1015
    %1122 = vst [vmem:[#allocation5 + $0xe8] sm:$0xff] %v1064
    %1123 = vst [vmem:[#allocation5 + $0xf0] sm:$0xff] %v821
    %1124 = vst [vmem:[#allocation5 + $0xf8] sm:$0xff] %v870
    %1125 = vst [vmem:[#allocation5 + $0x100] sm:$0xff] %v919
    %1126 = vst [vmem:[#allocation5 + $0x108] sm:$0xff] %v968
    %1127 = vst [vmem:[#allocation5 + $0x110] sm:$0xff] %v1017
    %1128 = vst [vmem:[#allocation5 + $0x118] sm:$0xff] %v1066
    %1129 = vst [vmem:[#allocation5 + $0x120] sm:$0xff] %v824
    %1130 = vst [vmem:[#allocation5 + $0x128] sm:$0xff] %v873
    %1131 = vst [vmem:[#allocation5 + $0x130] sm:$0xff] %v922
    %1132 = vst [vmem:[#allocation5 + $0x138] sm:$0xff] %v971
    %1133 = vst [vmem:[#allocation5 + $0x140] sm:$0xff] %v1020
    %1134 = vst [vmem:[#allocation5 + $0x148] sm:$0xff] %v1069
    %1135 = vst [vmem:[#allocation5 + $0x150] sm:$0xff] %v826
    %1136 = vst [vmem:[#allocation5 + $0x158] sm:$0xff] %v875
    %1137 = vst [vmem:[#allocation5 + $0x160] sm:$0xff] %v924
    %1138 = vst [vmem:[#allocation5 + $0x168] sm:$0xff] %v973
    %1139 = vst [vmem:[#allocation5 + $0x170] sm:$0xff] %v1022
    %1140 = vst [vmem:[#allocation5 + $0x178] sm:$0xff] %v1071
    %1141 = vst [vmem:[#allocation5 + $0x180] sm:$0xff] %v829
    %1142 = vst [vmem:[#allocation5 + $0x188] sm:$0xff] %v878
    %1143 = vst [vmem:[#allocation5 + $0x190] sm:$0xff] %v927
    %1144 = vst [vmem:[#allocation5 + $0x198] sm:$0xff] %v976
    %1145 = vst [vmem:[#allocation5 + $0x1a0] sm:$0xff] %v1025
    %1146 = vst [vmem:[#allocation5 + $0x1a8] sm:$0xff] %v1074
    %1147 = vst [vmem:[#allocation5 + $0x1b0] sm:$0xff] %v831
    %1148 = vst [vmem:[#allocation5 + $0x1b8] sm:$0xff] %v880
    %1149 = vst [vmem:[#allocation5 + $0x1c0] sm:$0xff] %v929
    %1150 = vst [vmem:[#allocation5 + $0x1c8] sm:$0xff] %v978
    %1151 = vst [vmem:[#allocation5 + $0x1d0] sm:$0xff] %v1027
    %1152 = vst [vmem:[#allocation5 + $0x1d8] sm:$0xff] %v1076
    %1153 = vst [vmem:[#allocation5 + $0x1e0] sm:$0xff] %v834
    %1154 = vst [vmem:[#allocation5 + $0x1e8] sm:$0xff] %v883
    %1155 = vst [vmem:[#allocation5 + $0x1f0] sm:$0xff] %v932
    %1156 = vst [vmem:[#allocation5 + $0x1f8] sm:$0xff] %v981
    %1157 = vst [vmem:[#allocation5 + $0x200] sm:$0xff] %v1030
    %1158 = vst [vmem:[#allocation5 + $0x208] sm:$0xff] %v1079
    %1159 = vst [vmem:[#allocation5 + $0x210] sm:$0xff] %v836
    %1160 = vst [vmem:[#allocation5 + $0x218] sm:$0xff] %v885
    %1161 = vst [vmem:[#allocation5 + $0x220] sm:$0xff] %v934
    %1162 = vst [vmem:[#allocation5 + $0x228] sm:$0xff] %v983
    %1163 = vst [vmem:[#allocation5 + $0x230] sm:$0xff] %v1032
    %1164 = vst [vmem:[#allocation5 + $0x238] sm:$0xff] %v1081
    %1165 = vst [vmem:[#allocation5 + $0x240] sm:$0xff] %v839
    %1166 = vst [vmem:[#allocation5 + $0x248] sm:$0xff] %v888
    %1167 = vst [vmem:[#allocation5 + $0x250] sm:$0xff] %v937
    %1168 = vst [vmem:[#allocation5 + $0x258] sm:$0xff] %v986
    %1169 = vst [vmem:[#allocation5 + $0x260] sm:$0xff] %v1035
    %1170 = vst [vmem:[#allocation5 + $0x268] sm:$0xff] %v1084
    %1171 = vst [vmem:[#allocation5 + $0x270] sm:$0xff] %v841
    %1172 = vst [vmem:[#allocation5 + $0x278] sm:$0xff] %v890
    %1173 = vst [vmem:[#allocation5 + $0x280] sm:$0xff] %v939
    %1174 = vst [vmem:[#allocation5 + $0x288] sm:$0xff] %v988
    %1175 = vst [vmem:[#allocation5 + $0x290] sm:$0xff] %v1037
    %1176 = vst [vmem:[#allocation5 + $0x298] sm:$0xff] %v1086
    %1177 = vst [vmem:[#allocation5 + $0x2a0] sm:$0xff] %v844
    %1178 = vst [vmem:[#allocation5 + $0x2a8] sm:$0xff] %v893
    %1179 = vst [vmem:[#allocation5 + $0x2b0] sm:$0xff] %v942
    %1180 = vst [vmem:[#allocation5 + $0x2b8] sm:$0xff] %v991
    %1181 = vst [vmem:[#allocation5 + $0x2c0] sm:$0xff] %v1040
    %1182 = vst [vmem:[#allocation5 + $0x2c8] sm:$0xff] %v1089
    %1183 = vst [vmem:[#allocation5 + $0x2d0] sm:$0xff] %v846
    %1184 = vst [vmem:[#allocation5 + $0x2d8] sm:$0xff] %v895
    %1185 = vst [vmem:[#allocation5 + $0x2e0] sm:$0xff] %v944
    %1186 = vst [vmem:[#allocation5 + $0x2e8] sm:$0xff] %v993
    %1187 = vst [vmem:[#allocation5 + $0x2f0] sm:$0xff] %v1042
    %1188 = vst [vmem:[#allocation5 + $0x2f8] sm:$0xff] %v1091
    // Predicated region
    $region22: #{tpu_custom_call.1} parent=1 // pred_check
      _
    $region23: #{tpu_custom_call.1} parent=1 // pred_check_branch
      %1190 = sbr.rel (0) target = $region25
    $region24: #{tpu_custom_call.1} parent=1 // pred_region
      %1192 = vsyncadd [#allocation4], 0
      %s1193 = sshll.u32 [#allocation5], 4
      %s1194 = int_to_ptr.vmem [resolvable:$true] %s1193
      %s1195 = sshll.u32 %s4, 4
      %s1196 = int_to_ptr.hbm [resolvable:$true] %s1195
      %1201 = dma.vmem_to_hbm [thread:$0]  %s1194, 12288, %s1196, [#allocation4], 768, 768, 48
    $region25: #{tpu_custom_call.1} parent=1 // pred_fallthru
      _
    // Predicated region
    $region26: #{tpu_custom_call.1} parent=1 // pred_check
      _
    $region27: #{tpu_custom_call.1} parent=1 // pred_check_branch
      %1203 = sbr.rel (0) target = $region29
    $region28: #{tpu_custom_call.1} parent=1 // pred_region
      _
    $region29: #{tpu_custom_call.1} parent=1 // pred_fallthru
      _
    // Predicated region
    $region30: #{tpu_custom_call.1} parent=1 // pred_check
      _
    $region31: #{tpu_custom_call.1} parent=1 // pred_check_branch
      %1205 = sbr.rel (0) target = $region33
    $region32: #{tpu_custom_call.1} parent=1 // pred_region
      %1207 = dma.done [#allocation4], 12288
    $region33: #{tpu_custom_call.1} parent=1 // pred_fallthru
      _
    // Predicated region
    $region34: #{tpu_custom_call.1} parent=1 // pred_check
      _
    $region35: #{tpu_custom_call.1} parent=1 // pred_check_branch
      %1209 = sbr.rel (0) target = $region37
    $region36: #{tpu_custom_call.1} parent=1 // pred_region
      _
    $region37: #{tpu_custom_call.1} parent=1 // pred_fallthru
      _
    %1210 = vsyncpa [#allocation3], 1
    %1211 = vsyncpa [#allocation4], 1

</llo_original>
